<compile_context>
chip_gen: v5e
topology: v5e:2x2
jax: 0.10.0
libtpu: 0.0.40
codegen_flags: <defaults>
</compile_context>

<pallas_src>
import functools

import jax
import jax.numpy as jnp
import numpy as np
from jax.experimental import pallas as pl
from jax.experimental.pallas import tpu as pltpu


def _round_up(x, m):
    return ((x + m - 1) // m) * m


def _pad_gate_blocks(w, in_pad, h, h_pad):
    """Pad a gate-blocked LSTM matrix/bias (in_dim, 4*h) -> (in_pad, 4*h_pad).

    Columns are gate-major blocks [i | f | g | o]; each block is padded from h to h_pad
    independently so the kernel's 128-wide per-gate lane slices stay correct.
    """
    in_dim = w.shape[0]
    w4 = w.reshape(in_dim, 4, h)
    w4 = jnp.pad(w4, ((0, in_pad - in_dim), (0, 0), (0, h_pad - h)))
    return w4.reshape(in_pad, 4 * h_pad)


# ---------------------------------------------------------------------------
# Fused kernel: one-hot embedding gather -> hoisted pre-gates -> unrolled LSTM
#               -> attention -> classifier
# ---------------------------------------------------------------------------
def fused_embed_lstm_attention_kernel(ids_ref, emb_ref, wih_ref, whh_ref, b_ref,
                                      lw_ref, lb_ref, out_ref, pre_sc):
    SB, G4 = pre_sc.shape          # (S*B_p, 4*H_p), padded & static
    B = out_ref.shape[0]           # B_p (sublane multiple)
    S = SB // B
    H = G4 // 4                    # H_p (lane multiple)
    V = emb_ref.shape[0]           # V_p (lane multiple)

    # ---- fused embedding gather: one-hot(ids) @ embed_table on the MXU ------------
    # ids are time-major (row r = t*B_p + b); padded batch rows carry id = -1 so their
    # one-hot row is all-zero -> the corresponding x row is exactly zero.
    col = jax.lax.broadcasted_iota(jnp.int32, (SB, V), 1)
    onehot = (col == ids_ref[...]).astype(jnp.bfloat16)        # exact 0/1 in bf16
    x = jnp.dot(onehot, emb_ref[...],
                preferred_element_type=jnp.float32)            # (SB, E_p)

    # ---- hoisted input projection for all timesteps: one (SB,E)@(E,4H) MXU call ----
    pre_sc[...] = (
        jnp.dot(x.astype(jnp.bfloat16), wih_ref[...],
                preferred_element_type=jnp.float32)
        + b_ref[...]
    )

    # ---- recurrence: fully unrolled; per-step hidden states kept in vregs ----------
    # PyTorch gate order (i, f, g, o); each gate block is a full, aligned lane tile.
    h = jnp.zeros((B, H), jnp.float32)
    c = jnp.zeros((B, H), jnp.float32)
    hs = []
    for t in range(S):
        pre_t = pre_sc[t * B:(t + 1) * B, :]                   # (B, 4H) static slice
        if t == 0:
            gates = pre_t                                      # h_0 == 0
        else:
            gates = pre_t + jnp.dot(h.astype(jnp.bfloat16), whh_ref[...],
                                    preferred_element_type=jnp.float32)
        i = jax.nn.sigmoid(gates[:, 0 * H:1 * H])
        f = jax.nn.sigmoid(gates[:, 1 * H:2 * H])
        g = jnp.tanh(gates[:, 2 * H:3 * H])
        o = jax.nn.sigmoid(gates[:, 3 * H:4 * H])
        c = f * c + i * g
        h = o * jnp.tanh(c)
        hs.append(h)                                           # one (8,128) vreg each

    # ---- attention_net: scores vs final hidden state, softmax over the S steps -----
    # NOTE: every reduction is per batch row (lane reduce); padded batch rows develop
    # nonzero garbage but are never reduced across and are sliced off in the wrapper.
    scores = [jnp.sum(ht * h, axis=1, keepdims=True) for ht in hs]    # S x (B, 1)
    m = scores[0]
    for s_t in scores[1:]:
        m = jnp.maximum(m, s_t)
    es = [jnp.exp(s_t - m) for s_t in scores]
    denom = es[0]
    for e_t in es[1:]:
        denom = denom + e_t
    inv_denom = pl.reciprocal(denom, approx=True)              # EUP slot, off VALU path
    ctx = es[0] * hs[0]
    for t in range(1, S):
        ctx = ctx + es[t] * hs[t]
    new_h = ctx * inv_denom                                    # (B, H)

    # ---- classifier (lane-dense (8,128) output store) -------------------------------
    out_ref[...] = (
        jnp.dot(new_h.astype(jnp.bfloat16), lw_ref[...],
                preferred_element_type=jnp.float32)
        + lb_ref[...]
    )


# ---------------------------------------------------------------------------
# One-time parameter preparation (hoisted out of the per-forward path)
# ---------------------------------------------------------------------------
def prepare_params(params):
    """Pad weights to (8,128)-friendly shapes and cast MXU operands to bf16. Run once."""
    V, E = params["embed_table"].shape
    H = params["w_hh_t"].shape[0]
    O = params["label_w_t"].shape[1]
    V_p = _round_up(V, 128)   # contraction lane dim of the one-hot gather matmul
    E_p = _round_up(E, 128)
    H_p = _round_up(H, 128)
    O_p = _round_up(O, 128)
    return {
        "emb": jnp.pad(params["embed_table"],
                       ((0, V_p - V), (0, E_p - E))).astype(jnp.bfloat16),
        "w_ih": _pad_gate_blocks(params["w_ih_t"], E_p, H, H_p).astype(jnp.bfloat16),
        "w_hh": _pad_gate_blocks(params["w_hh_t"], H_p, H, H_p).astype(jnp.bfloat16),
        "bias": _pad_gate_blocks(params["lstm_bias"], 1, H, H_p).astype(jnp.float32),
        "lw": jnp.pad(params["label_w_t"],
                      ((0, H_p - H), (0, O_p - O))).astype(jnp.bfloat16),
        "lb": jnp.pad(params["label_b"], ((0, 0), (0, O_p - O))).astype(jnp.float32),
    }


# ---------------------------------------------------------------------------
# Full forward pass
# ---------------------------------------------------------------------------
@functools.partial(jax.jit, static_argnames=("output_size",))
def attention_model_forward(token_ids, prepared, *, output_size):
    # TODO(synk): the full pre-trained BERT encoder (self.bert) is an external module;
    # it is stood in for by a deterministic embedding lookup fused into the kernel.
    B, S = token_ids.shape
    H4_p = prepared["w_hh"].shape[1]
    O_p = prepared["lw"].shape[1]
    B_p = _round_up(max(B, 8), 8)

    # Only wrapper-side data movement left: tiny fused transpose/pad/reshape of the
    # (B, S) int32 ids into time-major (S*B_p, 1) with pad id = -1.
    ids_tm = jnp.pad(jnp.transpose(token_ids).astype(jnp.int32),
                     ((0, 0), (0, B_p - B)), constant_values=-1)
    ids_col = ids_tm.reshape(S * B_p, 1)

    vmem = pl.BlockSpec(memory_space=pltpu.MemorySpace.VMEM)
    # Total VMEM footprint ~0.6 MiB (weights + 128 KiB pre-gate scratch) -> no explicit
    # vmem_limit_bytes needed on any generation (v7x scoped ceiling is 32 MiB).
    # TODO(synk): when B/S grow, add a batch grid axis with
    # dimension_semantics=("parallel",) to shard across v7x's two TensorCores and
    # re-derive the (S*B, 4H) scratch tiling against v7x's 64 MiB physical VMEM.
    logits_p = pl.pallas_call(
        fused_embed_lstm_attention_kernel,
        out_shape=jax.ShapeDtypeStruct((B_p, O_p), jnp.float32),
        in_specs=[vmem] * 7,
        out_specs=vmem,
        scratch_shapes=[pltpu.VMEM((S * B_p, H4_p), jnp.float32)],  # hoisted pre-gates
    )(ids_col, prepared["emb"], prepared["w_ih"], prepared["w_hh"],
      prepared["bias"], prepared["lw"], prepared["lb"])

    return logits_p[:B, :output_size]                           # (B, output_size)


# ---------------------------------------------------------------------------
# Pure-JAX f32 reference for verification
# ---------------------------------------------------------------------------
def reference_forward(token_ids, params):
    emb = jnp.take(params["embed_table"], token_ids, axis=0)
    x = jnp.transpose(emb, (1, 0, 2))  # (S, B, E)
    S, B, E = x.shape
    H = params["w_hh_t"].shape[0]
    h = jnp.zeros((B, H), jnp.float32)
    c = jnp.zeros((B, H), jnp.float32)
    outs = []
    for t in range(S):
        gates = x[t] @ params["w_ih_t"] + h @ params["w_hh_t"] + params["lstm_bias"]
        i = jax.nn.sigmoid(gates[:, 0 * H:1 * H])
        f = jax.nn.sigmoid(gates[:, 1 * H:2 * H])
        g = jnp.tanh(gates[:, 2 * H:3 * H])
        o = jax.nn.sigmoid(gates[:, 3 * H:4 * H])
        c = f * c + i * g
        h = o * jnp.tanh(c)
        outs.append(h)
    lstm_out = jnp.transpose(jnp.stack(outs, 0), (1, 0, 2))  # (B, S, H)
    attn = jnp.einsum("bsh,bh->bs", lstm_out, h)
    soft = jax.nn.softmax(attn, axis=1)
    new_h = jnp.einsum("bsh,bs->bh", lstm_out, soft)
    return new_h @ params["label_w_t"] + params["label_b"]


if __name__ == "__main__":
    # Small shapes consistent with the module's forward
    B, S = 2, 8            # batch, num_sequences (seq len)
    E = 32                 # embedding_length (== BERT output dim here)
    H = 32                 # hidden_size
    O = 2                  # output_size (pos, neg)
    V = 100                # vocab_size

    key = jax.random.PRNGKey(0)
    ks = jax.random.split(key, 8)
    scale = 0.1
    params = {
        "embed_table": scale * jax.random.normal(ks[0], (V, E), jnp.float32),
        # PyTorch LSTM weights W_ih (4H, E), W_hh (4H, H) -> stored pre-transposed
        "w_ih_t": scale * jax.random.normal(ks[1], (E, 4 * H), jnp.float32),
        "w_hh_t": scale * jax.random.normal(ks[2], (H, 4 * H), jnp.float32),
        # combined b_ih + b_hh, kept 2-D for clean broadcast in-kernel
        "lstm_bias": scale * jax.random.normal(ks[3], (1, 4 * H), jnp.float32),
        # nn.Linear(hidden, output): weight (O, H) -> stored transposed (H, O)
        "label_w_t": scale * jax.random.normal(ks[4], (H, O), jnp.float32),
        "label_b": scale * jax.random.normal(ks[5], (1, O), jnp.float32),
    }

    token_ids = jax.random.randint(ks[6], (B, S), 0, V, dtype=jnp.int32)

    prepared = prepare_params(params)   # one-time padding/casting, outside forward path
    logits = attention_model_forward(token_ids, prepared, output_size=O)
    logits = jax.block_until_ready(logits)

    ref = reference_forward(token_ids, params)
    # bf16 MXU operands (f32 accumulation) + approx-reciprocal softmax denominator
    # -> expected |error| ~1e-3 on O(0.1) logits; tolerance leaves comfortable margin.
    np.testing.assert_allclose(np.asarray(logits), np.asarray(ref), rtol=2e-2, atol=1e-2)

    assert logits.shape == (B, O)
    print("KERNEL_OK")
</pallas_src>

<mosaic_0001>
module attributes {stable_mosaic.version = 11 : i64} {
  func.func @fused_embed_lstm_attention_kernel(%arg0: memref<64x1xi32, #tpu.memory_space<vmem>>, %arg1: memref<128x128xbf16, #tpu.memory_space<vmem>>, %arg2: memref<128x512xbf16, #tpu.memory_space<vmem>>, %arg3: memref<128x512xbf16, #tpu.memory_space<vmem>>, %arg4: memref<1x512xf32, #tpu.memory_space<vmem>>, %arg5: memref<128x128xbf16, #tpu.memory_space<vmem>>, %arg6: memref<1x128xf32, #tpu.memory_space<vmem>>, %arg7: memref<8x128xf32, #tpu.memory_space<vmem>>, %arg8: memref<64x512xf32, #tpu.memory_space<vmem>>) attributes {dimension_semantics = [], scalar_prefetch = 0 : i64, scratch_operands = 1 : i64, tpu.core_type = #tpu.core_type<tc>} {
    %0 = tpu.iota {dimensions = array<i32: 1>} : vector<64x128xi32>
    %c0 = arith.constant 0 : index
    %c0_0 = arith.constant 0 : index
    %1 = vector.load %arg0[%c0, %c0_0] : memref<64x1xi32, #tpu.memory_space<vmem>>, vector<64x1xi32>
    %2 = vector.broadcast %1 : vector<64x1xi32> to vector<64x128xi32>
    %3 = arith.cmpi eq, %0, %2 : vector<64x128xi32>
    %4 = arith.extui %3 : vector<64x128xi1> to vector<64x128xi32>
    %5 = arith.sitofp %4 : vector<64x128xi32> to vector<64x128xf32>
    %6 = arith.truncf %5 : vector<64x128xf32> to vector<64x128xbf16>
    %c0_1 = arith.constant 0 : index
    %c0_2 = arith.constant 0 : index
    %7 = vector.load %arg1[%c0_1, %c0_2] : memref<128x128xbf16, #tpu.memory_space<vmem>>, vector<128x128xbf16>
    %cst = arith.constant dense<0.000000e+00> : vector<64x128xf32>
    %8 = tpu.matmul %6, %7, %cst {dimension_numbers = #tpu.dot_dimension_numbers<[1], [0], [0], [1], [0, 0, 1, 1], [], []>} : vector<64x128xbf16>, vector<128x128xbf16>, vector<64x128xf32> -> vector<64x128xf32>
    %9 = arith.truncf %8 : vector<64x128xf32> to vector<64x128xbf16>
    %c0_3 = arith.constant 0 : index
    %c0_4 = arith.constant 0 : index
    %10 = vector.load %arg2[%c0_3, %c0_4] : memref<128x512xbf16, #tpu.memory_space<vmem>>, vector<128x512xbf16>
    %cst_5 = arith.constant dense<0.000000e+00> : vector<64x512xf32>
    %11 = tpu.matmul %9, %10, %cst_5 {dimension_numbers = #tpu.dot_dimension_numbers<[1], [0], [0], [1], [0, 0, 1, 1], [], []>} : vector<64x128xbf16>, vector<128x512xbf16>, vector<64x512xf32> -> vector<64x512xf32>
    %c0_6 = arith.constant 0 : index
    %c0_7 = arith.constant 0 : index
    %12 = vector.load %arg4[%c0_6, %c0_7] : memref<1x512xf32, #tpu.memory_space<vmem>>, vector<1x512xf32>
    %13 = vector.broadcast %12 : vector<1x512xf32> to vector<64x512xf32>
    %14 = arith.addf %11, %13 : vector<64x512xf32>
    %c0_8 = arith.constant 0 : index
    %c0_9 = arith.constant 0 : index
    %15 = vector.load %arg8[%c0_8, %c0_9] : memref<64x512xf32, #tpu.memory_space<vmem>>, vector<64x512xf32>
    tpu.vector_store %arg8[%c0_8, %c0_9], %14 {strides = array<i32>} : memref<64x512xf32, #tpu.memory_space<vmem>>, vector<64x512xf32>,
    %cst_10 = arith.constant 0.000000e+00 : f32
    %16 = vector.broadcast %cst_10 : f32 to vector<8x128xf32>
    %c0_11 = arith.constant 0 : index
    %c0_12 = arith.constant 0 : index
    %17 = vector.load %arg8[%c0_11, %c0_12] : memref<64x512xf32, #tpu.memory_space<vmem>>, vector<8x512xf32>
    %18 = vector.extract_strided_slice %17 {offsets = [0, 0], sizes = [8, 128], strides = [1, 1]} : vector<8x512xf32> to vector<8x128xf32>
    %19 = arith.negf %18 : vector<8x128xf32>
    %20 = math.exp %19 : vector<8x128xf32>
    %cst_13 = arith.constant 1.000000e+00 : f32
    %21 = vector.broadcast %cst_13 : f32 to vector<8x128xf32>
    %22 = arith.addf %21, %20 : vector<8x128xf32>
    %23 = arith.divf %21, %22 : vector<8x128xf32>
    %24 = vector.extract_strided_slice %17 {offsets = [0, 128], sizes = [8, 128], strides = [1, 1]} : vector<8x512xf32> to vector<8x128xf32>
    %25 = arith.negf %24 : vector<8x128xf32>
    %26 = math.exp %25 : vector<8x128xf32>
    %cst_14 = arith.constant 1.000000e+00 : f32
    %27 = vector.broadcast %cst_14 : f32 to vector<8x128xf32>
    %28 = arith.addf %27, %26 : vector<8x128xf32>
    %29 = arith.divf %27, %28 : vector<8x128xf32>
    %30 = vector.extract_strided_slice %17 {offsets = [0, 256], sizes = [8, 128], strides = [1, 1]} : vector<8x512xf32> to vector<8x128xf32>
    %31 = math.tanh %30 : vector<8x128xf32>
    %32 = vector.extract_strided_slice %17 {offsets = [0, 384], sizes = [8, 128], strides = [1, 1]} : vector<8x512xf32> to vector<8x128xf32>
    %33 = arith.negf %32 : vector<8x128xf32>
    %34 = math.exp %33 : vector<8x128xf32>
    %cst_15 = arith.constant 1.000000e+00 : f32
    %35 = vector.broadcast %cst_15 : f32 to vector<8x128xf32>
    %36 = arith.addf %35, %34 : vector<8x128xf32>
    %37 = arith.divf %35, %36 : vector<8x128xf32>
    %38 = arith.mulf %29, %16 : vector<8x128xf32>
    %39 = arith.mulf %23, %31 : vector<8x128xf32>
    %40 = arith.addf %38, %39 : vector<8x128xf32>
    %41 = math.tanh %40 : vector<8x128xf32>
    %42 = arith.mulf %37, %41 : vector<8x128xf32>
    %c8 = arith.constant 8 : index
    %c0_16 = arith.constant 0 : index
    %43 = vector.load %arg8[%c8, %c0_16] : memref<64x512xf32, #tpu.memory_space<vmem>>, vector<8x512xf32>
    %44 = arith.truncf %42 : vector<8x128xf32> to vector<8x128xbf16>
    %c0_17 = arith.constant 0 : index
    %c0_18 = arith.constant 0 : index
    %45 = vector.load %arg3[%c0_17, %c0_18] : memref<128x512xbf16, #tpu.memory_space<vmem>>, vector<128x512xbf16>
    %cst_19 = arith.constant dense<0.000000e+00> : vector<8x512xf32>
    %46 = tpu.matmul %44, %45, %cst_19 {dimension_numbers = #tpu.dot_dimension_numbers<[1], [0], [0], [1], [0, 0, 1, 1], [], []>} : vector<8x128xbf16>, vector<128x512xbf16>, vector<8x512xf32> -> vector<8x512xf32>
    %47 = arith.addf %43, %46 : vector<8x512xf32>
    %48 = vector.extract_strided_slice %47 {offsets = [0, 0], sizes = [8, 128], strides = [1, 1]} : vector<8x512xf32> to vector<8x128xf32>
    %49 = arith.negf %48 : vector<8x128xf32>
    %50 = math.exp %49 : vector<8x128xf32>
    %cst_20 = arith.constant 1.000000e+00 : f32
    %51 = vector.broadcast %cst_20 : f32 to vector<8x128xf32>
    %52 = arith.addf %51, %50 : vector<8x128xf32>
    %53 = arith.divf %51, %52 : vector<8x128xf32>
    %54 = vector.extract_strided_slice %47 {offsets = [0, 128], sizes = [8, 128], strides = [1, 1]} : vector<8x512xf32> to vector<8x128xf32>
    %55 = arith.negf %54 : vector<8x128xf32>
    %56 = math.exp %55 : vector<8x128xf32>
    %cst_21 = arith.constant 1.000000e+00 : f32
    %57 = vector.broadcast %cst_21 : f32 to vector<8x128xf32>
    %58 = arith.addf %57, %56 : vector<8x128xf32>
    %59 = arith.divf %57, %58 : vector<8x128xf32>
    %60 = vector.extract_strided_slice %47 {offsets = [0, 256], sizes = [8, 128], strides = [1, 1]} : vector<8x512xf32> to vector<8x128xf32>
    %61 = math.tanh %60 : vector<8x128xf32>
    %62 = vector.extract_strided_slice %47 {offsets = [0, 384], sizes = [8, 128], strides = [1, 1]} : vector<8x512xf32> to vector<8x128xf32>
    %63 = arith.negf %62 : vector<8x128xf32>
    %64 = math.exp %63 : vector<8x128xf32>
    %cst_22 = arith.constant 1.000000e+00 : f32
    %65 = vector.broadcast %cst_22 : f32 to vector<8x128xf32>
    %66 = arith.addf %65, %64 : vector<8x128xf32>
    %67 = arith.divf %65, %66 : vector<8x128xf32>
    %68 = arith.mulf %59, %40 : vector<8x128xf32>
    %69 = arith.mulf %53, %61 : vector<8x128xf32>
    %70 = arith.addf %68, %69 : vector<8x128xf32>
    %71 = math.tanh %70 : vector<8x128xf32>
    %72 = arith.mulf %67, %71 : vector<8x128xf32>
    %c16 = arith.constant 16 : index
    %c0_23 = arith.constant 0 : index
    %73 = vector.load %arg8[%c16, %c0_23] : memref<64x512xf32, #tpu.memory_space<vmem>>, vector<8x512xf32>
    %74 = arith.truncf %72 : vector<8x128xf32> to vector<8x128xbf16>
    %c0_24 = arith.constant 0 : index
    %c0_25 = arith.constant 0 : index
    %75 = vector.load %arg3[%c0_24, %c0_25] : memref<128x512xbf16, #tpu.memory_space<vmem>>, vector<128x512xbf16>
    %cst_26 = arith.constant dense<0.000000e+00> : vector<8x512xf32>
    %76 = tpu.matmul %74, %75, %cst_26 {dimension_numbers = #tpu.dot_dimension_numbers<[1], [0], [0], [1], [0, 0, 1, 1], [], []>} : vector<8x128xbf16>, vector<128x512xbf16>, vector<8x512xf32> -> vector<8x512xf32>
    %77 = arith.addf %73, %76 : vector<8x512xf32>
    %78 = vector.extract_strided_slice %77 {offsets = [0, 0], sizes = [8, 128], strides = [1, 1]} : vector<8x512xf32> to vector<8x128xf32>
    %79 = arith.negf %78 : vector<8x128xf32>
    %80 = math.exp %79 : vector<8x128xf32>
    %cst_27 = arith.constant 1.000000e+00 : f32
    %81 = vector.broadcast %cst_27 : f32 to vector<8x128xf32>
    %82 = arith.addf %81, %80 : vector<8x128xf32>
    %83 = arith.divf %81, %82 : vector<8x128xf32>
    %84 = vector.extract_strided_slice %77 {offsets = [0, 128], sizes = [8, 128], strides = [1, 1]} : vector<8x512xf32> to vector<8x128xf32>
    %85 = arith.negf %84 : vector<8x128xf32>
    %86 = math.exp %85 : vector<8x128xf32>
    %cst_28 = arith.constant 1.000000e+00 : f32
    %87 = vector.broadcast %cst_28 : f32 to vector<8x128xf32>
    %88 = arith.addf %87, %86 : vector<8x128xf32>
    %89 = arith.divf %87, %88 : vector<8x128xf32>
    %90 = vector.extract_strided_slice %77 {offsets = [0, 256], sizes = [8, 128], strides = [1, 1]} : vector<8x512xf32> to vector<8x128xf32>
    %91 = math.tanh %90 : vector<8x128xf32>
    %92 = vector.extract_strided_slice %77 {offsets = [0, 384], sizes = [8, 128], strides = [1, 1]} : vector<8x512xf32> to vector<8x128xf32>
    %93 = arith.negf %92 : vector<8x128xf32>
    %94 = math.exp %93 : vector<8x128xf32>
    %cst_29 = arith.constant 1.000000e+00 : f32
    %95 = vector.broadcast %cst_29 : f32 to vector<8x128xf32>
    %96 = arith.addf %95, %94 : vector<8x128xf32>
    %97 = arith.divf %95, %96 : vector<8x128xf32>
    %98 = arith.mulf %89, %70 : vector<8x128xf32>
    %99 = arith.mulf %83, %91 : vector<8x128xf32>
    %100 = arith.addf %98, %99 : vector<8x128xf32>
    %101 = math.tanh %100 : vector<8x128xf32>
    %102 = arith.mulf %97, %101 : vector<8x128xf32>
    %c24 = arith.constant 24 : index
    %c0_30 = arith.constant 0 : index
    %103 = vector.load %arg8[%c24, %c0_30] : memref<64x512xf32, #tpu.memory_space<vmem>>, vector<8x512xf32>
    %104 = arith.truncf %102 : vector<8x128xf32> to vector<8x128xbf16>
    %c0_31 = arith.constant 0 : index
    %c0_32 = arith.constant 0 : index
    %105 = vector.load %arg3[%c0_31, %c0_32] : memref<128x512xbf16, #tpu.memory_space<vmem>>, vector<128x512xbf16>
    %cst_33 = arith.constant dense<0.000000e+00> : vector<8x512xf32>
    %106 = tpu.matmul %104, %105, %cst_33 {dimension_numbers = #tpu.dot_dimension_numbers<[1], [0], [0], [1], [0, 0, 1, 1], [], []>} : vector<8x128xbf16>, vector<128x512xbf16>, vector<8x512xf32> -> vector<8x512xf32>
    %107 = arith.addf %103, %106 : vector<8x512xf32>
    %108 = vector.extract_strided_slice %107 {offsets = [0, 0], sizes = [8, 128], strides = [1, 1]} : vector<8x512xf32> to vector<8x128xf32>
    %109 = arith.negf %108 : vector<8x128xf32>
    %110 = math.exp %109 : vector<8x128xf32>
    %cst_34 = arith.constant 1.000000e+00 : f32
    %111 = vector.broadcast %cst_34 : f32 to vector<8x128xf32>
    %112 = arith.addf %111, %110 : vector<8x128xf32>
    %113 = arith.divf %111, %112 : vector<8x128xf32>
    %114 = vector.extract_strided_slice %107 {offsets = [0, 128], sizes = [8, 128], strides = [1, 1]} : vector<8x512xf32> to vector<8x128xf32>
    %115 = arith.negf %114 : vector<8x128xf32>
    %116 = math.exp %115 : vector<8x128xf32>
    %cst_35 = arith.constant 1.000000e+00 : f32
    %117 = vector.broadcast %cst_35 : f32 to vector<8x128xf32>
    %118 = arith.addf %117, %116 : vector<8x128xf32>
    %119 = arith.divf %117, %118 : vector<8x128xf32>
    %120 = vector.extract_strided_slice %107 {offsets = [0, 256], sizes = [8, 128], strides = [1, 1]} : vector<8x512xf32> to vector<8x128xf32>
    %121 = math.tanh %120 : vector<8x128xf32>
    %122 = vector.extract_strided_slice %107 {offsets = [0, 384], sizes = [8, 128], strides = [1, 1]} : vector<8x512xf32> to vector<8x128xf32>
    %123 = arith.negf %122 : vector<8x128xf32>
    %124 = math.exp %123 : vector<8x128xf32>
    %cst_36 = arith.constant 1.000000e+00 : f32
    %125 = vector.broadcast %cst_36 : f32 to vector<8x128xf32>
    %126 = arith.addf %125, %124 : vector<8x128xf32>
    %127 = arith.divf %125, %126 : vector<8x128xf32>
    %128 = arith.mulf %119, %100 : vector<8x128xf32>
    %129 = arith.mulf %113, %121 : vector<8x128xf32>
    %130 = arith.addf %128, %129 : vector<8x128xf32>
    %131 = math.tanh %130 : vector<8x128xf32>
    %132 = arith.mulf %127, %131 : vector<8x128xf32>
    %c32 = arith.constant 32 : index
    %c0_37 = arith.constant 0 : index
    %133 = vector.load %arg8[%c32, %c0_37] : memref<64x512xf32, #tpu.memory_space<vmem>>, vector<8x512xf32>
    %134 = arith.truncf %132 : vector<8x128xf32> to vector<8x128xbf16>
    %c0_38 = arith.constant 0 : index
    %c0_39 = arith.constant 0 : index
    %135 = vector.load %arg3[%c0_38, %c0_39] : memref<128x512xbf16, #tpu.memory_space<vmem>>, vector<128x512xbf16>
    %cst_40 = arith.constant dense<0.000000e+00> : vector<8x512xf32>
    %136 = tpu.matmul %134, %135, %cst_40 {dimension_numbers = #tpu.dot_dimension_numbers<[1], [0], [0], [1], [0, 0, 1, 1], [], []>} : vector<8x128xbf16>, vector<128x512xbf16>, vector<8x512xf32> -> vector<8x512xf32>
    %137 = arith.addf %133, %136 : vector<8x512xf32>
    %138 = vector.extract_strided_slice %137 {offsets = [0, 0], sizes = [8, 128], strides = [1, 1]} : vector<8x512xf32> to vector<8x128xf32>
    %139 = arith.negf %138 : vector<8x128xf32>
    %140 = math.exp %139 : vector<8x128xf32>
    %cst_41 = arith.constant 1.000000e+00 : f32
    %141 = vector.broadcast %cst_41 : f32 to vector<8x128xf32>
    %142 = arith.addf %141, %140 : vector<8x128xf32>
    %143 = arith.divf %141, %142 : vector<8x128xf32>
    %144 = vector.extract_strided_slice %137 {offsets = [0, 128], sizes = [8, 128], strides = [1, 1]} : vector<8x512xf32> to vector<8x128xf32>
    %145 = arith.negf %144 : vector<8x128xf32>
    %146 = math.exp %145 : vector<8x128xf32>
    %cst_42 = arith.constant 1.000000e+00 : f32
    %147 = vector.broadcast %cst_42 : f32 to vector<8x128xf32>
    %148 = arith.addf %147, %146 : vector<8x128xf32>
    %149 = arith.divf %147, %148 : vector<8x128xf32>
    %150 = vector.extract_strided_slice %137 {offsets = [0, 256], sizes = [8, 128], strides = [1, 1]} : vector<8x512xf32> to vector<8x128xf32>
    %151 = math.tanh %150 : vector<8x128xf32>
    %152 = vector.extract_strided_slice %137 {offsets = [0, 384], sizes = [8, 128], strides = [1, 1]} : vector<8x512xf32> to vector<8x128xf32>
    %153 = arith.negf %152 : vector<8x128xf32>
    %154 = math.exp %153 : vector<8x128xf32>
    %cst_43 = arith.constant 1.000000e+00 : f32
    %155 = vector.broadcast %cst_43 : f32 to vector<8x128xf32>
    %156 = arith.addf %155, %154 : vector<8x128xf32>
    %157 = arith.divf %155, %156 : vector<8x128xf32>
    %158 = arith.mulf %149, %130 : vector<8x128xf32>
    %159 = arith.mulf %143, %151 : vector<8x128xf32>
    %160 = arith.addf %158, %159 : vector<8x128xf32>
    %161 = math.tanh %160 : vector<8x128xf32>
    %162 = arith.mulf %157, %161 : vector<8x128xf32>
    %c40 = arith.constant 40 : index
    %c0_44 = arith.constant 0 : index
    %163 = vector.load %arg8[%c40, %c0_44] : memref<64x512xf32, #tpu.memory_space<vmem>>, vector<8x512xf32>
    %164 = arith.truncf %162 : vector<8x128xf32> to vector<8x128xbf16>
    %c0_45 = arith.constant 0 : index
    %c0_46 = arith.constant 0 : index
    %165 = vector.load %arg3[%c0_45, %c0_46] : memref<128x512xbf16, #tpu.memory_space<vmem>>, vector<128x512xbf16>
    %cst_47 = arith.constant dense<0.000000e+00> : vector<8x512xf32>
    %166 = tpu.matmul %164, %165, %cst_47 {dimension_numbers = #tpu.dot_dimension_numbers<[1], [0], [0], [1], [0, 0, 1, 1], [], []>} : vector<8x128xbf16>, vector<128x512xbf16>, vector<8x512xf32> -> vector<8x512xf32>
    %167 = arith.addf %163, %166 : vector<8x512xf32>
    %168 = vector.extract_strided_slice %167 {offsets = [0, 0], sizes = [8, 128], strides = [1, 1]} : vector<8x512xf32> to vector<8x128xf32>
    %169 = arith.negf %168 : vector<8x128xf32>
    %170 = math.exp %169 : vector<8x128xf32>
    %cst_48 = arith.constant 1.000000e+00 : f32
    %171 = vector.broadcast %cst_48 : f32 to vector<8x128xf32>
    %172 = arith.addf %171, %170 : vector<8x128xf32>
    %173 = arith.divf %171, %172 : vector<8x128xf32>
    %174 = vector.extract_strided_slice %167 {offsets = [0, 128], sizes = [8, 128], strides = [1, 1]} : vector<8x512xf32> to vector<8x128xf32>
    %175 = arith.negf %174 : vector<8x128xf32>
    %176 = math.exp %175 : vector<8x128xf32>
    %cst_49 = arith.constant 1.000000e+00 : f32
    %177 = vector.broadcast %cst_49 : f32 to vector<8x128xf32>
    %178 = arith.addf %177, %176 : vector<8x128xf32>
    %179 = arith.divf %177, %178 : vector<8x128xf32>
    %180 = vector.extract_strided_slice %167 {offsets = [0, 256], sizes = [8, 128], strides = [1, 1]} : vector<8x512xf32> to vector<8x128xf32>
    %181 = math.tanh %180 : vector<8x128xf32>
    %182 = vector.extract_strided_slice %167 {offsets = [0, 384], sizes = [8, 128], strides = [1, 1]} : vector<8x512xf32> to vector<8x128xf32>
    %183 = arith.negf %182 : vector<8x128xf32>
    %184 = math.exp %183 : vector<8x128xf32>
    %cst_50 = arith.constant 1.000000e+00 : f32
    %185 = vector.broadcast %cst_50 : f32 to vector<8x128xf32>
    %186 = arith.addf %185, %184 : vector<8x128xf32>
    %187 = arith.divf %185, %186 : vector<8x128xf32>
    %188 = arith.mulf %179, %160 : vector<8x128xf32>
    %189 = arith.mulf %173, %181 : vector<8x128xf32>
    %190 = arith.addf %188, %189 : vector<8x128xf32>
    %191 = math.tanh %190 : vector<8x128xf32>
    %192 = arith.mulf %187, %191 : vector<8x128xf32>
    %c48 = arith.constant 48 : index
    %c0_51 = arith.constant 0 : index
    %193 = vector.load %arg8[%c48, %c0_51] : memref<64x512xf32, #tpu.memory_space<vmem>>, vector<8x512xf32>
    %194 = arith.truncf %192 : vector<8x128xf32> to vector<8x128xbf16>
    %c0_52 = arith.constant 0 : index
    %c0_53 = arith.constant 0 : index
    %195 = vector.load %arg3[%c0_52, %c0_53] : memref<128x512xbf16, #tpu.memory_space<vmem>>, vector<128x512xbf16>
    %cst_54 = arith.constant dense<0.000000e+00> : vector<8x512xf32>
    %196 = tpu.matmul %194, %195, %cst_54 {dimension_numbers = #tpu.dot_dimension_numbers<[1], [0], [0], [1], [0, 0, 1, 1], [], []>} : vector<8x128xbf16>, vector<128x512xbf16>, vector<8x512xf32> -> vector<8x512xf32>
    %197 = arith.addf %193, %196 : vector<8x512xf32>
    %198 = vector.extract_strided_slice %197 {offsets = [0, 0], sizes = [8, 128], strides = [1, 1]} : vector<8x512xf32> to vector<8x128xf32>
    %199 = arith.negf %198 : vector<8x128xf32>
    %200 = math.exp %199 : vector<8x128xf32>
    %cst_55 = arith.constant 1.000000e+00 : f32
    %201 = vector.broadcast %cst_55 : f32 to vector<8x128xf32>
    %202 = arith.addf %201, %200 : vector<8x128xf32>
    %203 = arith.divf %201, %202 : vector<8x128xf32>
    %204 = vector.extract_strided_slice %197 {offsets = [0, 128], sizes = [8, 128], strides = [1, 1]} : vector<8x512xf32> to vector<8x128xf32>
    %205 = arith.negf %204 : vector<8x128xf32>
    %206 = math.exp %205 : vector<8x128xf32>
    %cst_56 = arith.constant 1.000000e+00 : f32
    %207 = vector.broadcast %cst_56 : f32 to vector<8x128xf32>
    %208 = arith.addf %207, %206 : vector<8x128xf32>
    %209 = arith.divf %207, %208 : vector<8x128xf32>
    %210 = vector.extract_strided_slice %197 {offsets = [0, 256], sizes = [8, 128], strides = [1, 1]} : vector<8x512xf32> to vector<8x128xf32>
    %211 = math.tanh %210 : vector<8x128xf32>
    %212 = vector.extract_strided_slice %197 {offsets = [0, 384], sizes = [8, 128], strides = [1, 1]} : vector<8x512xf32> to vector<8x128xf32>
    %213 = arith.negf %212 : vector<8x128xf32>
    %214 = math.exp %213 : vector<8x128xf32>
    %cst_57 = arith.constant 1.000000e+00 : f32
    %215 = vector.broadcast %cst_57 : f32 to vector<8x128xf32>
    %216 = arith.addf %215, %214 : vector<8x128xf32>
    %217 = arith.divf %215, %216 : vector<8x128xf32>
    %218 = arith.mulf %209, %190 : vector<8x128xf32>
    %219 = arith.mulf %203, %211 : vector<8x128xf32>
    %220 = arith.addf %218, %219 : vector<8x128xf32>
    %221 = math.tanh %220 : vector<8x128xf32>
    %222 = arith.mulf %217, %221 : vector<8x128xf32>
    %c56 = arith.constant 56 : index
    %c0_58 = arith.constant 0 : index
    %223 = vector.load %arg8[%c56, %c0_58] : memref<64x512xf32, #tpu.memory_space<vmem>>, vector<8x512xf32>
    %224 = arith.truncf %222 : vector<8x128xf32> to vector<8x128xbf16>
    %c0_59 = arith.constant 0 : index
    %c0_60 = arith.constant 0 : index
    %225 = vector.load %arg3[%c0_59, %c0_60] : memref<128x512xbf16, #tpu.memory_space<vmem>>, vector<128x512xbf16>
    %cst_61 = arith.constant dense<0.000000e+00> : vector<8x512xf32>
    %226 = tpu.matmul %224, %225, %cst_61 {dimension_numbers = #tpu.dot_dimension_numbers<[1], [0], [0], [1], [0, 0, 1, 1], [], []>} : vector<8x128xbf16>, vector<128x512xbf16>, vector<8x512xf32> -> vector<8x512xf32>
    %227 = arith.addf %223, %226 : vector<8x512xf32>
    %228 = vector.extract_strided_slice %227 {offsets = [0, 0], sizes = [8, 128], strides = [1, 1]} : vector<8x512xf32> to vector<8x128xf32>
    %229 = arith.negf %228 : vector<8x128xf32>
    %230 = math.exp %229 : vector<8x128xf32>
    %cst_62 = arith.constant 1.000000e+00 : f32
    %231 = vector.broadcast %cst_62 : f32 to vector<8x128xf32>
    %232 = arith.addf %231, %230 : vector<8x128xf32>
    %233 = arith.divf %231, %232 : vector<8x128xf32>
    %234 = vector.extract_strided_slice %227 {offsets = [0, 128], sizes = [8, 128], strides = [1, 1]} : vector<8x512xf32> to vector<8x128xf32>
    %235 = arith.negf %234 : vector<8x128xf32>
    %236 = math.exp %235 : vector<8x128xf32>
    %cst_63 = arith.constant 1.000000e+00 : f32
    %237 = vector.broadcast %cst_63 : f32 to vector<8x128xf32>
    %238 = arith.addf %237, %236 : vector<8x128xf32>
    %239 = arith.divf %237, %238 : vector<8x128xf32>
    %240 = vector.extract_strided_slice %227 {offsets = [0, 256], sizes = [8, 128], strides = [1, 1]} : vector<8x512xf32> to vector<8x128xf32>
    %241 = math.tanh %240 : vector<8x128xf32>
    %242 = vector.extract_strided_slice %227 {offsets = [0, 384], sizes = [8, 128], strides = [1, 1]} : vector<8x512xf32> to vector<8x128xf32>
    %243 = arith.negf %242 : vector<8x128xf32>
    %244 = math.exp %243 : vector<8x128xf32>
    %cst_64 = arith.constant 1.000000e+00 : f32
    %245 = vector.broadcast %cst_64 : f32 to vector<8x128xf32>
    %246 = arith.addf %245, %244 : vector<8x128xf32>
    %247 = arith.divf %245, %246 : vector<8x128xf32>
    %248 = arith.mulf %239, %220 : vector<8x128xf32>
    %249 = arith.mulf %233, %241 : vector<8x128xf32>
    %250 = arith.addf %248, %249 : vector<8x128xf32>
    %251 = math.tanh %250 : vector<8x128xf32>
    %252 = arith.mulf %247, %251 : vector<8x128xf32>
    %253 = arith.mulf %42, %252 : vector<8x128xf32>
    %cst_65 = arith.constant dense<0.000000e+00> : vector<8xf32>
    %254 = vector.multi_reduction <add>, %253, %cst_65 [1] : vector<8x128xf32> to vector<8xf32>
    %255 = vector.shape_cast %254 : vector<8xf32> to vector<8x1xf32>
    %256 = arith.mulf %72, %252 : vector<8x128xf32>
    %cst_66 = arith.constant dense<0.000000e+00> : vector<8xf32>
    %257 = vector.multi_reduction <add>, %256, %cst_66 [1] : vector<8x128xf32> to vector<8xf32>
    %258 = vector.shape_cast %257 : vector<8xf32> to vector<8x1xf32>
    %259 = arith.mulf %102, %252 : vector<8x128xf32>
    %cst_67 = arith.constant dense<0.000000e+00> : vector<8xf32>
    %260 = vector.multi_reduction <add>, %259, %cst_67 [1] : vector<8x128xf32> to vector<8xf32>
    %261 = vector.shape_cast %260 : vector<8xf32> to vector<8x1xf32>
    %262 = arith.mulf %132, %252 : vector<8x128xf32>
    %cst_68 = arith.constant dense<0.000000e+00> : vector<8xf32>
    %263 = vector.multi_reduction <add>, %262, %cst_68 [1] : vector<8x128xf32> to vector<8xf32>
    %264 = vector.shape_cast %263 : vector<8xf32> to vector<8x1xf32>
    %265 = arith.mulf %162, %252 : vector<8x128xf32>
    %cst_69 = arith.constant dense<0.000000e+00> : vector<8xf32>
    %266 = vector.multi_reduction <add>, %265, %cst_69 [1] : vector<8x128xf32> to vector<8xf32>
    %267 = vector.shape_cast %266 : vector<8xf32> to vector<8x1xf32>
    %268 = arith.mulf %192, %252 : vector<8x128xf32>
    %cst_70 = arith.constant dense<0.000000e+00> : vector<8xf32>
    %269 = vector.multi_reduction <add>, %268, %cst_70 [1] : vector<8x128xf32> to vector<8xf32>
    %270 = vector.shape_cast %269 : vector<8xf32> to vector<8x1xf32>
    %271 = arith.mulf %222, %252 : vector<8x128xf32>
    %cst_71 = arith.constant dense<0.000000e+00> : vector<8xf32>
    %272 = vector.multi_reduction <add>, %271, %cst_71 [1] : vector<8x128xf32> to vector<8xf32>
    %273 = vector.shape_cast %272 : vector<8xf32> to vector<8x1xf32>
    %274 = arith.mulf %252, %252 : vector<8x128xf32>
    %cst_72 = arith.constant dense<0.000000e+00> : vector<8xf32>
    %275 = vector.multi_reduction <add>, %274, %cst_72 [1] : vector<8x128xf32> to vector<8xf32>
    %276 = vector.shape_cast %275 : vector<8xf32> to vector<8x1xf32>
    %277 = arith.maximumf %255, %258 : vector<8x1xf32>
    %278 = arith.maximumf %277, %261 : vector<8x1xf32>
    %279 = arith.maximumf %278, %264 : vector<8x1xf32>
    %280 = arith.maximumf %279, %267 : vector<8x1xf32>
    %281 = arith.maximumf %280, %270 : vector<8x1xf32>
    %282 = arith.maximumf %281, %273 : vector<8x1xf32>
    %283 = arith.maximumf %282, %276 : vector<8x1xf32>
    %284 = arith.subf %255, %283 : vector<8x1xf32>
    %285 = math.exp %284 : vector<8x1xf32>
    %286 = arith.subf %258, %283 : vector<8x1xf32>
    %287 = math.exp %286 : vector<8x1xf32>
    %288 = arith.subf %261, %283 : vector<8x1xf32>
    %289 = math.exp %288 : vector<8x1xf32>
    %290 = arith.subf %264, %283 : vector<8x1xf32>
    %291 = math.exp %290 : vector<8x1xf32>
    %292 = arith.subf %267, %283 : vector<8x1xf32>
    %293 = math.exp %292 : vector<8x1xf32>
    %294 = arith.subf %270, %283 : vector<8x1xf32>
    %295 = math.exp %294 : vector<8x1xf32>
    %296 = arith.subf %273, %283 : vector<8x1xf32>
    %297 = math.exp %296 : vector<8x1xf32>
    %298 = arith.subf %276, %283 : vector<8x1xf32>
    %299 = math.exp %298 : vector<8x1xf32>
    %300 = arith.addf %285, %287 : vector<8x1xf32>
    %301 = arith.addf %300, %289 : vector<8x1xf32>
    %302 = arith.addf %301, %291 : vector<8x1xf32>
    %303 = arith.addf %302, %293 : vector<8x1xf32>
    %304 = arith.addf %303, %295 : vector<8x1xf32>
    %305 = arith.addf %304, %297 : vector<8x1xf32>
    %306 = arith.addf %305, %299 : vector<8x1xf32>
    %307 = tpu.reciprocal %306 {approx = true} : vector<8x1xf32> -> vector<8x1xf32>
    %308 = vector.broadcast %285 : vector<8x1xf32> to vector<8x128xf32>
    %309 = arith.mulf %308, %42 : vector<8x128xf32>
    %310 = vector.broadcast %287 : vector<8x1xf32> to vector<8x128xf32>
    %311 = arith.mulf %310, %72 : vector<8x128xf32>
    %312 = arith.addf %309, %311 : vector<8x128xf32>
    %313 = vector.broadcast %289 : vector<8x1xf32> to vector<8x128xf32>
    %314 = arith.mulf %313, %102 : vector<8x128xf32>
    %315 = arith.addf %312, %314 : vector<8x128xf32>
    %316 = vector.broadcast %291 : vector<8x1xf32> to vector<8x128xf32>
    %317 = arith.mulf %316, %132 : vector<8x128xf32>
    %318 = arith.addf %315, %317 : vector<8x128xf32>
    %319 = vector.broadcast %293 : vector<8x1xf32> to vector<8x128xf32>
    %320 = arith.mulf %319, %162 : vector<8x128xf32>
    %321 = arith.addf %318, %320 : vector<8x128xf32>
    %322 = vector.broadcast %295 : vector<8x1xf32> to vector<8x128xf32>
    %323 = arith.mulf %322, %192 : vector<8x128xf32>
    %324 = arith.addf %321, %323 : vector<8x128xf32>
    %325 = vector.broadcast %297 : vector<8x1xf32> to vector<8x128xf32>
    %326 = arith.mulf %325, %222 : vector<8x128xf32>
    %327 = arith.addf %324, %326 : vector<8x128xf32>
    %328 = vector.broadcast %299 : vector<8x1xf32> to vector<8x128xf32>
    %329 = arith.mulf %328, %252 : vector<8x128xf32>
    %330 = arith.addf %327, %329 : vector<8x128xf32>
    %331 = vector.broadcast %307 : vector<8x1xf32> to vector<8x128xf32>
    %332 = arith.mulf %330, %331 : vector<8x128xf32>
    %333 = arith.truncf %332 : vector<8x128xf32> to vector<8x128xbf16>
    %c0_73 = arith.constant 0 : index
    %c0_74 = arith.constant 0 : index
    %334 = vector.load %arg5[%c0_73, %c0_74] : memref<128x128xbf16, #tpu.memory_space<vmem>>, vector<128x128xbf16>
    %cst_75 = arith.constant dense<0.000000e+00> : vector<8x128xf32>
    %335 = tpu.matmul %333, %334, %cst_75 {dimension_numbers = #tpu.dot_dimension_numbers<[1], [0], [0], [1], [0, 0, 1, 1], [], []>} : vector<8x128xbf16>, vector<128x128xbf16>, vector<8x128xf32> -> vector<8x128xf32>
    %c0_76 = arith.constant 0 : index
    %c0_77 = arith.constant 0 : index
    %336 = vector.load %arg6[%c0_76, %c0_77] : memref<1x128xf32, #tpu.memory_space<vmem>>, vector<1x128xf32>
    %337 = vector.broadcast %336 : vector<1x128xf32> to vector<8x128xf32>
    %338 = arith.addf %335, %337 : vector<8x128xf32>
    %c0_78 = arith.constant 0 : index
    %c0_79 = arith.constant 0 : index
    %339 = vector.load %arg7[%c0_78, %c0_79] : memref<8x128xf32, #tpu.memory_space<vmem>>, vector<8x128xf32>
    tpu.vector_store %arg7[%c0_78, %c0_79], %338 {strides = array<i32>} : memref<8x128xf32, #tpu.memory_space<vmem>>, vector<8x128xf32>,
    return
  }
}

</mosaic_0001>

<llo_original>
// kernel: attention_model_forward.1
$region0: #{attention_model_forward.1}
  #allocation0 [shape = 'u32[]', space=smem, size = 0x4, offset = 0x4, fixed_abs, tag = 'smem constant byte address 0x4 - core index']
  #allocation1 [shape = 'u32[72,128]{1,0:T(1,128)}', space=vmem, size = 0x9000, scoped, tag = 'internal scratch']
  #allocation2 [shape = 'f32[64,512]{1,0:T(8,128)}', space=vmem, size = 0x20000, scoped, tag = 'scratch operand']
  %s0 = inlined_call_operand.vmem [shape: s32[64,1], index: 0, kind: input, shape index: {}]
  %s1 = inlined_call_operand.vmem [shape: bf16[128,128], index: 1, kind: input, shape index: {}]
  %s2 = inlined_call_operand.hbm [shape: bf16[128,512], index: 2, kind: input, shape index: {}]
  %s3 = inlined_call_operand.hbm [shape: bf16[128,512], index: 3, kind: input, shape index: {}]
  %s4 = inlined_call_operand.vmem [shape: f32[1,512], index: 4, kind: input, shape index: {}]
  %s5 = inlined_call_operand.hbm [shape: bf16[128,128], index: 5, kind: input, shape index: {}]
  %s6 = inlined_call_operand.vmem [shape: f32[1,128], index: 6, kind: input, shape index: {}]
  %s7 = inlined_call_operand.vmem [shape: f32[8,128], index: 7, kind: output, shape index: {}]
  %s8 = sld [smem:[#allocation0]]
  $region50: #{attention_model_forward.1} parent=0
    _
  %s10 = ssub.s32 1, %s8
  %s11 = scalar_select 0, %s10, %s8
  $region1: #{attention_model_forward.1} parent=0
    #allocation3 [shape = 'u8[131072]{0}', space=vmem, size = 0x20000, scoped, tag = 'input window, operand 2, single buffered']
    #allocation4 [shape = 's32[1]{0}', space=sflag, size = 0x4, scoped, tag = 'scoped memory for attention_model_forward.1']
    #allocation5 [shape = 'u8[131072]{0}', space=vmem, size = 0x20000, scoped, tag = 'input window, operand 3, single buffered']
    #allocation6 [shape = 's32[1]{0}', space=sflag, size = 0x4, scoped, tag = 'scoped memory for attention_model_forward.1']
    #allocation7 [shape = 'u8[32768]{0}', space=vmem, size = 0x8000, scoped, tag = 'input window, operand 5, single buffered']
    %12 = vsyncpa [#allocation4], 0
    %13 = vsyncpa [#allocation6], 0
    // Predicated region
    $region2: #{attention_model_forward.1} parent=1 // pred_check
      _
    $region3: #{attention_model_forward.1} parent=1 // pred_check_branch
      %15 = sbr.rel (0) target = $region5
    $region4: #{attention_model_forward.1} parent=1 // pred_region
      _
    $region5: #{attention_model_forward.1} parent=1 // pred_fallthru
      _
    // Predicated region
    $region6: #{attention_model_forward.1} parent=1 // pred_check
      _
    $region7: #{attention_model_forward.1} parent=1 // pred_check_branch
      %17 = sbr.rel (0) target = $region9
    $region8: #{attention_model_forward.1} parent=1 // pred_region
      _
    $region9: #{attention_model_forward.1} parent=1 // pred_fallthru
      _
    // Predicated region
    $region10: #{attention_model_forward.1} parent=1 // pred_check
      _
    $region11: #{attention_model_forward.1} parent=1 // pred_check_branch
      %19 = sbr.rel (0) target = $region13
    $region12: #{attention_model_forward.1} parent=1 // pred_region
      %21 = vsyncadd [#allocation4], 0
      %s22 = sshll.u32 %s2, 4
      %s23 = int_to_ptr.hbm [resolvable:$true] %s22
      %s24 = sshll.u32 [#allocation3], 4
      %s25 = int_to_ptr.vmem [resolvable:$true] %s24
      %30 = dma.hbm_to_vmem [thread:$0]  %s23, 4096, %s25, [#allocation4], 256, 256, 16
    $region13: #{attention_model_forward.1} parent=1 // pred_fallthru
      _
    // Predicated region
    $region14: #{attention_model_forward.1} parent=1 // pred_check
      _
    $region15: #{attention_model_forward.1} parent=1 // pred_check_branch
      %32 = sbr.rel (0) target = $region17
    $region16: #{attention_model_forward.1} parent=1 // pred_region
      %34 = vsyncadd [#allocation6], 0
      %s35 = sshll.u32 %s3, 4
      %s36 = int_to_ptr.hbm [resolvable:$true] %s35
      %s37 = sshll.u32 [#allocation5], 4
      %s38 = int_to_ptr.vmem [resolvable:$true] %s37
      %43 = dma.hbm_to_vmem [thread:$0]  %s36, 4096, %s38, [#allocation6], 256, 256, 16
    $region17: #{attention_model_forward.1} parent=1 // pred_fallthru
      _
    // Predicated region
    $region18: #{attention_model_forward.1} parent=1 // pred_check
      _
    $region19: #{attention_model_forward.1} parent=1 // pred_check_branch
      %45 = sbr.rel (0) target = $region21
    $region20: #{attention_model_forward.1} parent=1 // pred_region
      _
    $region21: #{attention_model_forward.1} parent=1 // pred_fallthru
      _
    // Predicated region
    $region22: #{attention_model_forward.1} parent=1 // pred_check
      _
    $region23: #{attention_model_forward.1} parent=1 // pred_check_branch
      %47 = sbr.rel (0) target = $region25
    $region24: #{attention_model_forward.1} parent=1 // pred_region
      %49 = vsyncadd [#allocation6], 0
      %s50 = sshll.u32 %s5, 4
      %s51 = int_to_ptr.hbm [resolvable:$true] %s50
      %s52 = sshll.u32 [#allocation7], 4
      %s53 = int_to_ptr.vmem [resolvable:$true] %s52
      %58 = dma.hbm_to_vmem [thread:$0]  %s51, 1024, %s53, [#allocation6], 64, 64, 4
    $region25: #{attention_model_forward.1} parent=1 // pred_fallthru
      _
    // Predicated region
    $region26: #{attention_model_forward.1} parent=1 // pred_check
      _
    $region27: #{attention_model_forward.1} parent=1 // pred_check_branch
      %60 = sbr.rel (0) target = $region29
    $region28: #{attention_model_forward.1} parent=1 // pred_region
      _
    $region29: #{attention_model_forward.1} parent=1 // pred_fallthru
      _
    // Predicated region
    $region30: #{attention_model_forward.1} parent=1 // pred_check
      _
    $region31: #{attention_model_forward.1} parent=1 // pred_check_branch
      %62 = sbr.rel (0) target = $region33
    $region32: #{attention_model_forward.1} parent=1 // pred_region
      %64 = dma.done [#allocation4], 4096
    $region33: #{attention_model_forward.1} parent=1 // pred_fallthru
      _
    // Predicated region
    $region34: #{attention_model_forward.1} parent=1 // pred_check
      _
    $region35: #{attention_model_forward.1} parent=1 // pred_check_branch
      %66 = sbr.rel (0) target = $region37
    $region36: #{attention_model_forward.1} parent=1 // pred_region
      %68 = dma.done [#allocation6], 4096
    $region37: #{attention_model_forward.1} parent=1 // pred_fallthru
      _
    // Predicated region
    $region38: #{attention_model_forward.1} parent=1 // pred_check
      _
    $region39: #{attention_model_forward.1} parent=1 // pred_check_branch
      %70 = sbr.rel (0) target = $region41
    $region40: #{attention_model_forward.1} parent=1 // pred_region
      %72 = dma.done [#allocation6], 1024
    $region41: #{attention_model_forward.1} parent=1 // pred_fallthru
      _
    %v73 = vlaneseq
    %v74 = vand.u32 %v73, 127
    %v75 = vld [vmem:[%s0] sm:$0xff]
    %v76 = vld [vmem:[%s0 + $0x8] sm:$0xff]
    %v77 = vld [vmem:[%s0 + $0x10] sm:$0xff]
    %v78 = vld [vmem:[%s0 + $0x18] sm:$0xff]
    %v79 = vld [vmem:[%s0 + $0x20] sm:$0xff]
    %v80 = vld [vmem:[%s0 + $0x28] sm:$0xff]
    %v81 = vld [vmem:[%s0 + $0x30] sm:$0xff]
    %v82 = vld [vmem:[%s0 + $0x38] sm:$0xff]
    %83 = vset.pattern.permute.xlu0 0
    %84 = vperm.xlu0 %83, %v75
    %v85 = vpop.permute.xlu0 %84
    %86 = vset.pattern.permute.xlu0 0
    %87 = vperm.xlu0 %86, %v76
    %v88 = vpop.permute.xlu0 %87
    %89 = vset.pattern.permute.xlu0 0
    %90 = vperm.xlu0 %89, %v77
    %v91 = vpop.permute.xlu0 %90
    %92 = vset.pattern.permute.xlu0 0
    %93 = vperm.xlu0 %92, %v78
    %v94 = vpop.permute.xlu0 %93
    %95 = vset.pattern.permute.xlu0 0
    %96 = vperm.xlu0 %95, %v79
    %v97 = vpop.permute.xlu0 %96
    %98 = vset.pattern.permute.xlu0 0
    %99 = vperm.xlu0 %98, %v80
    %v100 = vpop.permute.xlu0 %99
    %101 = vset.pattern.permute.xlu0 0
    %102 = vperm.xlu0 %101, %v81
    %v103 = vpop.permute.xlu0 %102
    %104 = vset.pattern.permute.xlu0 0
    %105 = vperm.xlu0 %104, %v82
    %v106 = vpop.permute.xlu0 %105
    %vm107 = vcmp.eq.s32.totalorder %v74, %v85
    %vm108 = vcmp.eq.s32.totalorder %v74, %v88
    %vm109 = vcmp.eq.s32.totalorder %v74, %v91
    %vm110 = vcmp.eq.s32.totalorder %v74, %v94
    %vm111 = vcmp.eq.s32.totalorder %v74, %v97
    %vm112 = vcmp.eq.s32.totalorder %v74, %v100
    %vm113 = vcmp.eq.s32.totalorder %v74, %v103
    %vm114 = vcmp.eq.s32.totalorder %v74, %v106
    %v115 = vsel %vm107, 1, 0
    %v116 = vsel %vm108, 1, 0
    %v117 = vsel %vm109, 1, 0
    %v118 = vsel %vm110, 1, 0
    %v119 = vsel %vm111, 1, 0
    %v120 = vsel %vm112, 1, 0
    %v121 = vsel %vm113, 1, 0
    %v122 = vsel %vm114, 1, 0
    %v123 = vcvt.s32.f32 %v115
    %v124 = vcvt.s32.f32 %v116
    %v125 = vcvt.s32.f32 %v117
    %v126 = vcvt.s32.f32 %v118
    %v127 = vcvt.s32.f32 %v119
    %v128 = vcvt.s32.f32 %v120
    %v129 = vcvt.s32.f32 %v121
    %v130 = vcvt.s32.f32 %v122
    %v131 = vpack.c.bf16 %v124, %v123
    %v132 = vpack.c.bf16 %v126, %v125
    %v133 = vpack.c.bf16 %v128, %v127
    %v134 = vpack.c.bf16 %v130, %v129
    %v135 = vld [vmem:[%s1] sm:$0xf]
    %v136 = vld [vmem:[%s1 + $0x4] sm:$0xf]
    %v137 = vld [vmem:[%s1 + $0x8] sm:$0xf]
    %v138 = vld [vmem:[%s1 + $0xc] sm:$0xf]
    %v139 = vld [vmem:[%s1 + $0x10] sm:$0xf]
    %v140 = vld [vmem:[%s1 + $0x14] sm:$0xf]
    %v141 = vld [vmem:[%s1 + $0x18] sm:$0xf]
    %v142 = vld [vmem:[%s1 + $0x1c] sm:$0xf]
    %v143 = vld [vmem:[%s1 + $0x20] sm:$0xf]
    %v144 = vld [vmem:[%s1 + $0x24] sm:$0xf]
    %v145 = vld [vmem:[%s1 + $0x28] sm:$0xf]
    %v146 = vld [vmem:[%s1 + $0x2c] sm:$0xf]
    %v147 = vld [vmem:[%s1 + $0x30] sm:$0xf]
    %v148 = vld [vmem:[%s1 + $0x34] sm:$0xf]
    %v149 = vld [vmem:[%s1 + $0x38] sm:$0xf]
    %v150 = vld [vmem:[%s1 + $0x3c] sm:$0xf]
    %v167 = vunpack.c.l.b16 %v135
    %v168 = vunpack.c.l.b16 %v136
    %v169 = vunpack.c.l.b16 %v137
    %v170 = vunpack.c.l.b16 %v138
    %v171 = vunpack.c.l.b16 %v139
    %v172 = vunpack.c.l.b16 %v140
    %v173 = vunpack.c.l.b16 %v141
    %v174 = vunpack.c.l.b16 %v142
    %v175 = vunpack.c.l.b16 %v143
    %v176 = vunpack.c.l.b16 %v144
    %v177 = vunpack.c.l.b16 %v145
    %v178 = vunpack.c.l.b16 %v146
    %v179 = vunpack.c.l.b16 %v147
    %v180 = vunpack.c.l.b16 %v148
    %v181 = vunpack.c.l.b16 %v149
    %v182 = vunpack.c.l.b16 %v150
    %v183 = vpack.c.b16 %v168, %v167
    %v184 = vpack.c.b16 %v170, %v169
    %v185 = vpack.c.b16 %v172, %v171
    %v186 = vpack.c.b16 %v174, %v173
    %v187 = vpack.c.b16 %v176, %v175
    %v188 = vpack.c.b16 %v178, %v177
    %v189 = vpack.c.b16 %v180, %v179
    %v190 = vpack.c.b16 %v182, %v181
    %199 = vmatpush.bf16.msra.mxu0 %v190
    %200 = vmatpush.bf16.msra.mxu0 %v189
    %201 = vmatpush.bf16.msra.mxu0 %v188
    %202 = vmatpush.bf16.msra.mxu0 %v187
    %203 = vmatpush.bf16.msra.mxu0 %v186
    %204 = vmatpush.bf16.msra.mxu0 %v185
    %205 = vmatpush.bf16.msra.mxu0 %v184
    %206 = vmatpush.bf16.msra.mxu0 %v183
    %207 = vmatmul.bf16.gmra.mxu0 %v131
    %v208 = vpop.f32.mrf.mxu0
    %v209 = vadd.f32 0.0, %v208
    %v210 = vpop.f32.mrf.mxu0
    %v211 = vadd.f32 0.0, %v210
    %212 = vmatmul.bf16.gmra.mxu0 %v132
    %v213 = vpop.f32.mrf.mxu0
    %v214 = vadd.f32 0.0, %v213
    %v215 = vpop.f32.mrf.mxu0
    %v216 = vadd.f32 0.0, %v215
    %217 = vmatmul.bf16.gmra.mxu0 %v133
    %v218 = vpop.f32.mrf.mxu0
    %v219 = vadd.f32 0.0, %v218
    %v220 = vpop.f32.mrf.mxu0
    %v221 = vadd.f32 0.0, %v220
    %222 = vmatmul.bf16.gmra.mxu0 %v134
    %v223 = vpop.f32.mrf.mxu0
    %v224 = vadd.f32 0.0, %v223
    %v225 = vpop.f32.mrf.mxu0
    %v226 = vadd.f32 0.0, %v225
    %227 = vdwg.mxu0
    %v228 = vpack.c.bf16 %v211, %v209
    %v229 = vpack.c.bf16 %v216, %v214
    %v230 = vpack.c.bf16 %v221, %v219
    %v231 = vpack.c.bf16 %v226, %v224
    %v232 = vld [vmem:[#allocation3] sm:$0xff]
    %v233 = vld [vmem:[#allocation3 + $0x8] sm:$0xff]
    %v234 = vld [vmem:[#allocation3 + $0x10] sm:$0xff]
    %v235 = vld [vmem:[#allocation3 + $0x18] sm:$0xff]
    %v236 = vld [vmem:[#allocation3 + $0x20] sm:$0xff]
    %v237 = vld [vmem:[#allocation3 + $0x28] sm:$0xff]
    %v238 = vld [vmem:[#allocation3 + $0x30] sm:$0xff]
    %v239 = vld [vmem:[#allocation3 + $0x38] sm:$0xff]
    %v240 = vld [vmem:[#allocation3 + $0x40] sm:$0xff]
    %v241 = vld [vmem:[#allocation3 + $0x48] sm:$0xff]
    %v242 = vld [vmem:[#allocation3 + $0x50] sm:$0xff]
    %v243 = vld [vmem:[#allocation3 + $0x58] sm:$0xff]
    %v244 = vld [vmem:[#allocation3 + $0x60] sm:$0xff]
    %v245 = vld [vmem:[#allocation3 + $0x68] sm:$0xff]
    %v246 = vld [vmem:[#allocation3 + $0x70] sm:$0xff]
    %v247 = vld [vmem:[#allocation3 + $0x78] sm:$0xff]
    %v248 = vld [vmem:[#allocation3 + $0x80] sm:$0xff]
    %v249 = vld [vmem:[#allocation3 + $0x88] sm:$0xff]
    %v250 = vld [vmem:[#allocation3 + $0x90] sm:$0xff]
    %v251 = vld [vmem:[#allocation3 + $0x98] sm:$0xff]
    %v252 = vld [vmem:[#allocation3 + $0xa0] sm:$0xff]
    %v253 = vld [vmem:[#allocation3 + $0xa8] sm:$0xff]
    %v254 = vld [vmem:[#allocation3 + $0xb0] sm:$0xff]
    %v255 = vld [vmem:[#allocation3 + $0xb8] sm:$0xff]
    %v256 = vld [vmem:[#allocation3 + $0xc0] sm:$0xff]
    %v257 = vld [vmem:[#allocation3 + $0xc8] sm:$0xff]
    %v258 = vld [vmem:[#allocation3 + $0xd0] sm:$0xff]
    %v259 = vld [vmem:[#allocation3 + $0xd8] sm:$0xff]
    %v260 = vld [vmem:[#allocation3 + $0xe0] sm:$0xff]
    %v261 = vld [vmem:[#allocation3 + $0xe8] sm:$0xff]
    %v262 = vld [vmem:[#allocation3 + $0xf0] sm:$0xff]
    %v263 = vld [vmem:[#allocation3 + $0xf8] sm:$0xff]
    %v264 = vld [vmem:[%s4] sm:$0xf]
    %v266 = vperm.slane %v264, 0
    %v267 = vperm.slane %v264, 1
    %v268 = vperm.slane %v264, 2
    %v269 = vperm.slane %v264, 3
    %v306 = vunpack.c.l.b16 %v232
    %v307 = vunpack.c.h.b16 %v232
    %v308 = vunpack.c.l.b16 %v233
    %v309 = vunpack.c.h.b16 %v233
    %v310 = vunpack.c.l.b16 %v234
    %v311 = vunpack.c.h.b16 %v234
    %v312 = vunpack.c.l.b16 %v235
    %v313 = vunpack.c.h.b16 %v235
    %v314 = vunpack.c.l.b16 %v236
    %v315 = vunpack.c.h.b16 %v236
    %v316 = vunpack.c.l.b16 %v237
    %v317 = vunpack.c.h.b16 %v237
    %v318 = vunpack.c.l.b16 %v238
    %v319 = vunpack.c.h.b16 %v238
    %v320 = vunpack.c.l.b16 %v239
    %v321 = vunpack.c.h.b16 %v239
    %v322 = vunpack.c.l.b16 %v240
    %v323 = vunpack.c.h.b16 %v240
    %v324 = vunpack.c.l.b16 %v241
    %v325 = vunpack.c.h.b16 %v241
    %v326 = vunpack.c.l.b16 %v242
    %v327 = vunpack.c.h.b16 %v242
    %v328 = vunpack.c.l.b16 %v243
    %v329 = vunpack.c.h.b16 %v243
    %v330 = vunpack.c.l.b16 %v244
    %v331 = vunpack.c.h.b16 %v244
    %v332 = vunpack.c.l.b16 %v245
    %v333 = vunpack.c.h.b16 %v245
    %v334 = vunpack.c.l.b16 %v246
    %v335 = vunpack.c.h.b16 %v246
    %v336 = vunpack.c.l.b16 %v247
    %v337 = vunpack.c.h.b16 %v247
    %v338 = vunpack.c.l.b16 %v248
    %v339 = vunpack.c.h.b16 %v248
    %v340 = vunpack.c.l.b16 %v249
    %v341 = vunpack.c.h.b16 %v249
    %v342 = vunpack.c.l.b16 %v250
    %v343 = vunpack.c.h.b16 %v250
    %v344 = vunpack.c.l.b16 %v251
    %v345 = vunpack.c.h.b16 %v251
    %v346 = vunpack.c.l.b16 %v252
    %v347 = vunpack.c.h.b16 %v252
    %v348 = vunpack.c.l.b16 %v253
    %v349 = vunpack.c.h.b16 %v253
    %v350 = vunpack.c.l.b16 %v254
    %v351 = vunpack.c.h.b16 %v254
    %v352 = vunpack.c.l.b16 %v255
    %v353 = vunpack.c.h.b16 %v255
    %v354 = vunpack.c.l.b16 %v256
    %v355 = vunpack.c.h.b16 %v256
    %v356 = vunpack.c.l.b16 %v257
    %v357 = vunpack.c.h.b16 %v257
    %v358 = vunpack.c.l.b16 %v258
    %v359 = vunpack.c.h.b16 %v258
    %v360 = vunpack.c.l.b16 %v259
    %v361 = vunpack.c.h.b16 %v259
    %v362 = vunpack.c.l.b16 %v260
    %v363 = vunpack.c.h.b16 %v260
    %v364 = vunpack.c.l.b16 %v261
    %v365 = vunpack.c.h.b16 %v261
    %v366 = vunpack.c.l.b16 %v262
    %v367 = vunpack.c.h.b16 %v262
    %v368 = vunpack.c.l.b16 %v263
    %v369 = vunpack.c.h.b16 %v263
    %v370 = vpack.c.b16 %v310, %v306
    %v371 = vpack.c.b16 %v311, %v307
    %v372 = vpack.c.b16 %v312, %v308
    %v373 = vpack.c.b16 %v313, %v309
    %v374 = vpack.c.b16 %v318, %v314
    %v375 = vpack.c.b16 %v319, %v315
    %v376 = vpack.c.b16 %v320, %v316
    %v377 = vpack.c.b16 %v321, %v317
    %v378 = vpack.c.b16 %v326, %v322
    %v379 = vpack.c.b16 %v327, %v323
    %v380 = vpack.c.b16 %v328, %v324
    %v381 = vpack.c.b16 %v329, %v325
    %v382 = vpack.c.b16 %v334, %v330
    %v383 = vpack.c.b16 %v335, %v331
    %v384 = vpack.c.b16 %v336, %v332
    %v385 = vpack.c.b16 %v337, %v333
    %v386 = vpack.c.b16 %v342, %v338
    %v387 = vpack.c.b16 %v343, %v339
    %v388 = vpack.c.b16 %v344, %v340
    %v389 = vpack.c.b16 %v345, %v341
    %v390 = vpack.c.b16 %v350, %v346
    %v391 = vpack.c.b16 %v351, %v347
    %v392 = vpack.c.b16 %v352, %v348
    %v393 = vpack.c.b16 %v353, %v349
    %v394 = vpack.c.b16 %v358, %v354
    %v395 = vpack.c.b16 %v359, %v355
    %v396 = vpack.c.b16 %v360, %v356
    %v397 = vpack.c.b16 %v361, %v357
    %v398 = vpack.c.b16 %v366, %v362
    %v399 = vpack.c.b16 %v367, %v363
    %v400 = vpack.c.b16 %v368, %v364
    %v401 = vpack.c.b16 %v369, %v365
    %434 = vmatpush.bf16.msra.mxu0 %v398
    %435 = vmatpush.bf16.msra.mxu0 %v394
    %436 = vmatpush.bf16.msra.mxu0 %v390
    %437 = vmatpush.bf16.msra.mxu0 %v386
    %438 = vmatpush.bf16.msra.mxu0 %v382
    %439 = vmatpush.bf16.msra.mxu0 %v378
    %440 = vmatpush.bf16.msra.mxu0 %v374
    %441 = vmatpush.bf16.msra.mxu0 %v370
    %442 = vmatmul.bf16.gmra.mxu0 %v228
    %v443 = vpop.f32.mrf.mxu0
    %v444 = vadd.f32 %v266, %v443
    %v445 = vpop.f32.mrf.mxu0
    %v446 = vadd.f32 %v266, %v445
    %447 = vmatmul.bf16.gmra.mxu0 %v229
    %v448 = vpop.f32.mrf.mxu0
    %v449 = vadd.f32 %v266, %v448
    %v450 = vpop.f32.mrf.mxu0
    %v451 = vadd.f32 %v266, %v450
    %452 = vmatmul.bf16.gmra.mxu0 %v230
    %v453 = vpop.f32.mrf.mxu0
    %v454 = vadd.f32 %v266, %v453
    %v455 = vpop.f32.mrf.mxu0
    %v456 = vadd.f32 %v266, %v455
    %457 = vmatmul.bf16.gmra.mxu0 %v231
    %v458 = vpop.f32.mrf.mxu0
    %v459 = vadd.f32 %v266, %v458
    %v460 = vpop.f32.mrf.mxu0
    %v461 = vadd.f32 %v266, %v460
    %462 = vdwg.mxu0
    %463 = vmatpush.bf16.msra.mxu0 %v399
    %464 = vmatpush.bf16.msra.mxu0 %v395
    %465 = vmatpush.bf16.msra.mxu0 %v391
    %466 = vmatpush.bf16.msra.mxu0 %v387
    %467 = vmatpush.bf16.msra.mxu0 %v383
    %468 = vmatpush.bf16.msra.mxu0 %v379
    %469 = vmatpush.bf16.msra.mxu0 %v375
    %470 = vmatpush.bf16.msra.mxu0 %v371
    %471 = vmatmul.bf16.gmra.mxu0 %v228
    %v472 = vpop.f32.mrf.mxu0
    %v473 = vadd.f32 %v267, %v472
    %v474 = vpop.f32.mrf.mxu0
    %v475 = vadd.f32 %v267, %v474
    %476 = vmatmul.bf16.gmra.mxu0 %v229
    %v477 = vpop.f32.mrf.mxu0
    %v478 = vadd.f32 %v267, %v477
    %v479 = vpop.f32.mrf.mxu0
    %v480 = vadd.f32 %v267, %v479
    %481 = vmatmul.bf16.gmra.mxu0 %v230
    %v482 = vpop.f32.mrf.mxu0
    %v483 = vadd.f32 %v267, %v482
    %v484 = vpop.f32.mrf.mxu0
    %v485 = vadd.f32 %v267, %v484
    %486 = vmatmul.bf16.gmra.mxu0 %v231
    %v487 = vpop.f32.mrf.mxu0
    %v488 = vadd.f32 %v267, %v487
    %v489 = vpop.f32.mrf.mxu0
    %v490 = vadd.f32 %v267, %v489
    %491 = vdwg.mxu0
    %492 = vmatpush.bf16.msra.mxu0 %v400
    %493 = vmatpush.bf16.msra.mxu0 %v396
    %494 = vmatpush.bf16.msra.mxu0 %v392
    %495 = vmatpush.bf16.msra.mxu0 %v388
    %496 = vmatpush.bf16.msra.mxu0 %v384
    %497 = vmatpush.bf16.msra.mxu0 %v380
    %498 = vmatpush.bf16.msra.mxu0 %v376
    %499 = vmatpush.bf16.msra.mxu0 %v372
    %500 = vmatmul.bf16.gmra.mxu0 %v228
    %v501 = vpop.f32.mrf.mxu0
    %v502 = vadd.f32 %v268, %v501
    %v503 = vpop.f32.mrf.mxu0
    %v504 = vadd.f32 %v268, %v503
    %505 = vmatmul.bf16.gmra.mxu0 %v229
    %v506 = vpop.f32.mrf.mxu0
    %v507 = vadd.f32 %v268, %v506
    %v508 = vpop.f32.mrf.mxu0
    %v509 = vadd.f32 %v268, %v508
    %510 = vmatmul.bf16.gmra.mxu0 %v230
    %v511 = vpop.f32.mrf.mxu0
    %v512 = vadd.f32 %v268, %v511
    %v513 = vpop.f32.mrf.mxu0
    %v514 = vadd.f32 %v268, %v513
    %515 = vmatmul.bf16.gmra.mxu0 %v231
    %v516 = vpop.f32.mrf.mxu0
    %v517 = vadd.f32 %v268, %v516
    %v518 = vpop.f32.mrf.mxu0
    %v519 = vadd.f32 %v268, %v518
    %520 = vdwg.mxu0
    %521 = vmatpush.bf16.msra.mxu0 %v401
    %522 = vmatpush.bf16.msra.mxu0 %v397
    %523 = vmatpush.bf16.msra.mxu0 %v393
    %524 = vmatpush.bf16.msra.mxu0 %v389
    %525 = vmatpush.bf16.msra.mxu0 %v385
    %526 = vmatpush.bf16.msra.mxu0 %v381
    %527 = vmatpush.bf16.msra.mxu0 %v377
    %528 = vmatpush.bf16.msra.mxu0 %v373
    %529 = vmatmul.bf16.gmra.mxu0 %v228
    %v530 = vpop.f32.mrf.mxu0
    %v531 = vadd.f32 %v269, %v530
    %v532 = vpop.f32.mrf.mxu0
    %v533 = vadd.f32 %v269, %v532
    %534 = vmatmul.bf16.gmra.mxu0 %v229
    %v535 = vpop.f32.mrf.mxu0
    %v536 = vadd.f32 %v269, %v535
    %v537 = vpop.f32.mrf.mxu0
    %v538 = vadd.f32 %v269, %v537
    %539 = vmatmul.bf16.gmra.mxu0 %v230
    %v540 = vpop.f32.mrf.mxu0
    %v541 = vadd.f32 %v269, %v540
    %v542 = vpop.f32.mrf.mxu0
    %v543 = vadd.f32 %v269, %v542
    %544 = vmatmul.bf16.gmra.mxu0 %v231
    %v545 = vpop.f32.mrf.mxu0
    %v546 = vadd.f32 %v269, %v545
    %v547 = vpop.f32.mrf.mxu0
    %v548 = vadd.f32 %v269, %v547
    %549 = vdwg.mxu0
    %550 = vst [vmem:[#allocation2] sm:$0xff] %v444
    %551 = vst [vmem:[#allocation2 + $0x8] sm:$0xff] %v473
    %552 = vst [vmem:[#allocation2 + $0x10] sm:$0xff] %v502
    %553 = vst [vmem:[#allocation2 + $0x18] sm:$0xff] %v531
    %554 = vst [vmem:[#allocation2 + $0x20] sm:$0xff] %v446
    %555 = vst [vmem:[#allocation2 + $0x28] sm:$0xff] %v475
    %556 = vst [vmem:[#allocation2 + $0x30] sm:$0xff] %v504
    %557 = vst [vmem:[#allocation2 + $0x38] sm:$0xff] %v533
    %558 = vst [vmem:[#allocation2 + $0x40] sm:$0xff] %v449
    %559 = vst [vmem:[#allocation2 + $0x48] sm:$0xff] %v478
    %560 = vst [vmem:[#allocation2 + $0x50] sm:$0xff] %v507
    %561 = vst [vmem:[#allocation2 + $0x58] sm:$0xff] %v536
    %562 = vst [vmem:[#allocation2 + $0x60] sm:$0xff] %v451
    %563 = vst [vmem:[#allocation2 + $0x68] sm:$0xff] %v480
    %564 = vst [vmem:[#allocation2 + $0x70] sm:$0xff] %v509
    %565 = vst [vmem:[#allocation2 + $0x78] sm:$0xff] %v538
    %566 = vst [vmem:[#allocation2 + $0x80] sm:$0xff] %v454
    %567 = vst [vmem:[#allocation2 + $0x88] sm:$0xff] %v483
    %568 = vst [vmem:[#allocation2 + $0x90] sm:$0xff] %v512
    %569 = vst [vmem:[#allocation2 + $0x98] sm:$0xff] %v541
    %570 = vst [vmem:[#allocation2 + $0xa0] sm:$0xff] %v456
    %571 = vst [vmem:[#allocation2 + $0xa8] sm:$0xff] %v485
    %572 = vst [vmem:[#allocation2 + $0xb0] sm:$0xff] %v514
    %573 = vst [vmem:[#allocation2 + $0xb8] sm:$0xff] %v543
    %574 = vst [vmem:[#allocation2 + $0xc0] sm:$0xff] %v459
    %575 = vst [vmem:[#allocation2 + $0xc8] sm:$0xff] %v488
    %576 = vst [vmem:[#allocation2 + $0xd0] sm:$0xff] %v517
    %577 = vst [vmem:[#allocation2 + $0xd8] sm:$0xff] %v546
    %578 = vst [vmem:[#allocation2 + $0xe0] sm:$0xff] %v461
    %579 = vst [vmem:[#allocation2 + $0xe8] sm:$0xff] %v490
    %580 = vst [vmem:[#allocation2 + $0xf0] sm:$0xff] %v519
    %581 = vst [vmem:[#allocation2 + $0xf8] sm:$0xff] %v548
    %v582 = vld [vmem:[#allocation2] sm:$0xff]
    %v583 = vld [vmem:[#allocation2 + $0x8] sm:$0xff]
    %v584 = vld [vmem:[#allocation2 + $0x10] sm:$0xff]
    %v585 = vld [vmem:[#allocation2 + $0x18] sm:$0xff]
    %v586 = vxor.u32 %v582, 2147483648
    %v587 = vmul.f32 %v586, 1.442695
    %v588 = vpow.pop %v587
    %v589 = vadd.f32 %v588, 1.0
    %v590 = vrcp.pop %v589
    %v591 = vmul.f32 %v589, %v590
    %v592 = vsub.f32 1.0, %v591
    %v593 = vmul.f32 %v590, %v592
    %v594 = vadd.f32 %v590, %v593
    %vm595 = vweird.f32 %v589
    %vm596 = vweird.f32 %v590
    %vm597 = vmor %vm595, %vm596
    %v598 = vsel %vm597, %v590, %v594
    %v599 = vand.u32 2147483647, %v589
    %vm600 = vcmp.eq.f32.partialorder %v599, 8.507059e+37
    %v601 = vand.u32 %v589, 2147483648
    %v602 = vor.u32 1.1754944e-38, %v601
    %v603 = vsel %vm600, %v602, %v598
    %v604 = vmul.f32 1.0, %v603
    %v605 = vxor.u32 %v583, 2147483648
    %v606 = vmul.f32 %v605, 1.442695
    %v607 = vpow.pop %v606
    %v608 = vadd.f32 %v607, 1.0
    %v609 = vrcp.pop %v608
    %v610 = vmul.f32 %v608, %v609
    %v611 = vsub.f32 1.0, %v610
    %v612 = vmul.f32 %v609, %v611
    %v613 = vadd.f32 %v609, %v612
    %vm614 = vweird.f32 %v608
    %vm615 = vweird.f32 %v609
    %vm616 = vmor %vm614, %vm615
    %v617 = vsel %vm616, %v609, %v613
    %v618 = vand.u32 2147483647, %v608
    %vm619 = vcmp.eq.f32.partialorder %v618, 8.507059e+37
    %v620 = vand.u32 %v608, 2147483648
    %v621 = vor.u32 1.1754944e-38, %v620
    %v622 = vsel %vm619, %v621, %v617
    %v623 = vmul.f32 1.0, %v622
    %v624 = vtanh.pop %v584
    %v625 = vxor.u32 %v585, 2147483648
    %v626 = vmul.f32 %v625, 1.442695
    %v627 = vpow.pop %v626
    %v628 = vadd.f32 %v627, 1.0
    %v629 = vrcp.pop %v628
    %v630 = vmul.f32 %v628, %v629
    %v631 = vsub.f32 1.0, %v630
    %v632 = vmul.f32 %v629, %v631
    %v633 = vadd.f32 %v629, %v632
    %vm634 = vweird.f32 %v628
    %vm635 = vweird.f32 %v629
    %vm636 = vmor %vm634, %vm635
    %v637 = vsel %vm636, %v629, %v633
    %v638 = vand.u32 2147483647, %v628
    %vm639 = vcmp.eq.f32.partialorder %v638, 8.507059e+37
    %v640 = vand.u32 %v628, 2147483648
    %v641 = vor.u32 1.1754944e-38, %v640
    %v642 = vsel %vm639, %v641, %v637
    %v643 = vmul.f32 1.0, %v642
    %v644 = vmul.f32 %v623, 0.0
    %v645 = vmul.f32 %v604, %v624
    %v646 = vadd.f32 %v644, %v645
    %v647 = vtanh.pop %v646
    %v648 = vmul.f32 %v643, %v647
    %v649 = vld [vmem:[#allocation2 + $0x20] sm:$0xff]
    %v650 = vld [vmem:[#allocation2 + $0x28] sm:$0xff]
    %v651 = vld [vmem:[#allocation2 + $0x30] sm:$0xff]
    %v652 = vld [vmem:[#allocation2 + $0x38] sm:$0xff]
    %v653 = vpack.c.bf16 %v648, %v648
    %v654 = vld [vmem:[#allocation5] sm:$0xff]
    %v655 = vld [vmem:[#allocation5 + $0x8] sm:$0xff]
    %v656 = vld [vmem:[#allocation5 + $0x10] sm:$0xff]
    %v657 = vld [vmem:[#allocation5 + $0x18] sm:$0xff]
    %v658 = vld [vmem:[#allocation5 + $0x20] sm:$0xff]
    %v659 = vld [vmem:[#allocation5 + $0x28] sm:$0xff]
    %v660 = vld [vmem:[#allocation5 + $0x30] sm:$0xff]
    %v661 = vld [vmem:[#allocation5 + $0x38] sm:$0xff]
    %v662 = vld [vmem:[#allocation5 + $0x40] sm:$0xff]
    %v663 = vld [vmem:[#allocation5 + $0x48] sm:$0xff]
    %v664 = vld [vmem:[#allocation5 + $0x50] sm:$0xff]
    %v665 = vld [vmem:[#allocation5 + $0x58] sm:$0xff]
    %v666 = vld [vmem:[#allocation5 + $0x60] sm:$0xff]
    %v667 = vld [vmem:[#allocation5 + $0x68] sm:$0xff]
    %v668 = vld [vmem:[#allocation5 + $0x70] sm:$0xff]
    %v669 = vld [vmem:[#allocation5 + $0x78] sm:$0xff]
    %v670 = vld [vmem:[#allocation5 + $0x80] sm:$0xff]
    %v671 = vld [vmem:[#allocation5 + $0x88] sm:$0xff]
    %v672 = vld [vmem:[#allocation5 + $0x90] sm:$0xff]
    %v673 = vld [vmem:[#allocation5 + $0x98] sm:$0xff]
    %v674 = vld [vmem:[#allocation5 + $0xa0] sm:$0xff]
    %v675 = vld [vmem:[#allocation5 + $0xa8] sm:$0xff]
    %v676 = vld [vmem:[#allocation5 + $0xb0] sm:$0xff]
    %v677 = vld [vmem:[#allocation5 + $0xb8] sm:$0xff]
    %v678 = vld [vmem:[#allocation5 + $0xc0] sm:$0xff]
    %v679 = vld [vmem:[#allocation5 + $0xc8] sm:$0xff]
    %v680 = vld [vmem:[#allocation5 + $0xd0] sm:$0xff]
    %v681 = vld [vmem:[#allocation5 + $0xd8] sm:$0xff]
    %v682 = vld [vmem:[#allocation5 + $0xe0] sm:$0xff]
    %v683 = vld [vmem:[#allocation5 + $0xe8] sm:$0xff]
    %v684 = vld [vmem:[#allocation5 + $0xf0] sm:$0xff]
    %v685 = vld [vmem:[#allocation5 + $0xf8] sm:$0xff]
    %v718 = vunpack.c.l.b16 %v654
    %v719 = vunpack.c.h.b16 %v654
    %v720 = vunpack.c.l.b16 %v655
    %v721 = vunpack.c.h.b16 %v655
    %v722 = vunpack.c.l.b16 %v656
    %v723 = vunpack.c.h.b16 %v656
    %v724 = vunpack.c.l.b16 %v657
    %v725 = vunpack.c.h.b16 %v657
    %v726 = vunpack.c.l.b16 %v658
    %v727 = vunpack.c.h.b16 %v658
    %v728 = vunpack.c.l.b16 %v659
    %v729 = vunpack.c.h.b16 %v659
    %v730 = vunpack.c.l.b16 %v660
    %v731 = vunpack.c.h.b16 %v660
    %v732 = vunpack.c.l.b16 %v661
    %v733 = vunpack.c.h.b16 %v661
    %v734 = vunpack.c.l.b16 %v662
    %v735 = vunpack.c.h.b16 %v662
    %v736 = vunpack.c.l.b16 %v663
    %v737 = vunpack.c.h.b16 %v663
    %v738 = vunpack.c.l.b16 %v664
    %v739 = vunpack.c.h.b16 %v664
    %v740 = vunpack.c.l.b16 %v665
    %v741 = vunpack.c.h.b16 %v665
    %v742 = vunpack.c.l.b16 %v666
    %v743 = vunpack.c.h.b16 %v666
    %v744 = vunpack.c.l.b16 %v667
    %v745 = vunpack.c.h.b16 %v667
    %v746 = vunpack.c.l.b16 %v668
    %v747 = vunpack.c.h.b16 %v668
    %v748 = vunpack.c.l.b16 %v669
    %v749 = vunpack.c.h.b16 %v669
    %v750 = vunpack.c.l.b16 %v670
    %v751 = vunpack.c.h.b16 %v670
    %v752 = vunpack.c.l.b16 %v671
    %v753 = vunpack.c.h.b16 %v671
    %v754 = vunpack.c.l.b16 %v672
    %v755 = vunpack.c.h.b16 %v672
    %v756 = vunpack.c.l.b16 %v673
    %v757 = vunpack.c.h.b16 %v673
    %v758 = vunpack.c.l.b16 %v674
    %v759 = vunpack.c.h.b16 %v674
    %v760 = vunpack.c.l.b16 %v675
    %v761 = vunpack.c.h.b16 %v675
    %v762 = vunpack.c.l.b16 %v676
    %v763 = vunpack.c.h.b16 %v676
    %v764 = vunpack.c.l.b16 %v677
    %v765 = vunpack.c.h.b16 %v677
    %v766 = vunpack.c.l.b16 %v678
    %v767 = vunpack.c.h.b16 %v678
    %v768 = vunpack.c.l.b16 %v679
    %v769 = vunpack.c.h.b16 %v679
    %v770 = vunpack.c.l.b16 %v680
    %v771 = vunpack.c.h.b16 %v680
    %v772 = vunpack.c.l.b16 %v681
    %v773 = vunpack.c.h.b16 %v681
    %v774 = vunpack.c.l.b16 %v682
    %v775 = vunpack.c.h.b16 %v682
    %v776 = vunpack.c.l.b16 %v683
    %v777 = vunpack.c.h.b16 %v683
    %v778 = vunpack.c.l.b16 %v684
    %v779 = vunpack.c.h.b16 %v684
    %v780 = vunpack.c.l.b16 %v685
    %v781 = vunpack.c.h.b16 %v685
    %v782 = vpack.c.b16 %v722, %v718
    %v783 = vpack.c.b16 %v723, %v719
    %v784 = vpack.c.b16 %v724, %v720
    %v785 = vpack.c.b16 %v725, %v721
    %v786 = vpack.c.b16 %v730, %v726
    %v787 = vpack.c.b16 %v731, %v727
    %v788 = vpack.c.b16 %v732, %v728
    %v789 = vpack.c.b16 %v733, %v729
    %v790 = vpack.c.b16 %v738, %v734
    %v791 = vpack.c.b16 %v739, %v735
    %v792 = vpack.c.b16 %v740, %v736
    %v793 = vpack.c.b16 %v741, %v737
    %v794 = vpack.c.b16 %v746, %v742
    %v795 = vpack.c.b16 %v747, %v743
    %v796 = vpack.c.b16 %v748, %v744
    %v797 = vpack.c.b16 %v749, %v745
    %v798 = vpack.c.b16 %v754, %v750
    %v799 = vpack.c.b16 %v755, %v751
    %v800 = vpack.c.b16 %v756, %v752
    %v801 = vpack.c.b16 %v757, %v753
    %v802 = vpack.c.b16 %v762, %v758
    %v803 = vpack.c.b16 %v763, %v759
    %v804 = vpack.c.b16 %v764, %v760
    %v805 = vpack.c.b16 %v765, %v761
    %v806 = vpack.c.b16 %v770, %v766
    %v807 = vpack.c.b16 %v771, %v767
    %v808 = vpack.c.b16 %v772, %v768
    %v809 = vpack.c.b16 %v773, %v769
    %v810 = vpack.c.b16 %v778, %v774
    %v811 = vpack.c.b16 %v779, %v775
    %v812 = vpack.c.b16 %v780, %v776
    %v813 = vpack.c.b16 %v781, %v777
    %846 = vmatpush.bf16.msra.mxu0 %v810
    %847 = vmatpush.bf16.msra.mxu0 %v806
    %848 = vmatpush.bf16.msra.mxu0 %v802
    %849 = vmatpush.bf16.msra.mxu0 %v798
    %850 = vmatpush.bf16.msra.mxu0 %v794
    %851 = vmatpush.bf16.msra.mxu0 %v790
    %852 = vmatpush.bf16.msra.mxu0 %v786
    %853 = vmatpush.bf16.msra.mxu0 %v782
    %854 = vmatmul.bf16.gmra.mxu0 %v653
    %v855 = vpop.f32.mrf.mxu0
    %v856 = vadd.f32 0.0, %v855
    %v857 = vpop.f32.mrf.mxu0
    %858 = vdwg.mxu0
    %859 = vmatpush.bf16.msra.mxu0 %v811
    %860 = vmatpush.bf16.msra.mxu0 %v807
    %861 = vmatpush.bf16.msra.mxu0 %v803
    %862 = vmatpush.bf16.msra.mxu0 %v799
    %863 = vmatpush.bf16.msra.mxu0 %v795
    %864 = vmatpush.bf16.msra.mxu0 %v791
    %865 = vmatpush.bf16.msra.mxu0 %v787
    %866 = vmatpush.bf16.msra.mxu0 %v783
    %867 = vmatmul.bf16.gmra.mxu0 %v653
    %v868 = vpop.f32.mrf.mxu0
    %v869 = vadd.f32 0.0, %v868
    %v870 = vpop.f32.mrf.mxu0
    %871 = vdwg.mxu0
    %872 = vmatpush.bf16.msra.mxu0 %v812
    %873 = vmatpush.bf16.msra.mxu0 %v808
    %874 = vmatpush.bf16.msra.mxu0 %v804
    %875 = vmatpush.bf16.msra.mxu0 %v800
    %876 = vmatpush.bf16.msra.mxu0 %v796
    %877 = vmatpush.bf16.msra.mxu0 %v792
    %878 = vmatpush.bf16.msra.mxu0 %v788
    %879 = vmatpush.bf16.msra.mxu0 %v784
    %880 = vmatmul.bf16.gmra.mxu0 %v653
    %v881 = vpop.f32.mrf.mxu0
    %v882 = vadd.f32 0.0, %v881
    %v883 = vpop.f32.mrf.mxu0
    %884 = vdwg.mxu0
    %885 = vmatpush.bf16.msra.mxu0 %v813
    %886 = vmatpush.bf16.msra.mxu0 %v809
    %887 = vmatpush.bf16.msra.mxu0 %v805
    %888 = vmatpush.bf16.msra.mxu0 %v801
    %889 = vmatpush.bf16.msra.mxu0 %v797
    %890 = vmatpush.bf16.msra.mxu0 %v793
    %891 = vmatpush.bf16.msra.mxu0 %v789
    %892 = vmatpush.bf16.msra.mxu0 %v785
    %893 = vmatmul.bf16.gmra.mxu0 %v653
    %v894 = vpop.f32.mrf.mxu0
    %v895 = vadd.f32 0.0, %v894
    %v896 = vpop.f32.mrf.mxu0
    %897 = vdwg.mxu0
    %v898 = vadd.f32 %v649, %v856
    %v899 = vadd.f32 %v650, %v869
    %v900 = vadd.f32 %v651, %v882
    %v901 = vadd.f32 %v652, %v895
    %v902 = vxor.u32 %v898, 2147483648
    %v903 = vmul.f32 %v902, 1.442695
    %v904 = vpow.pop %v903
    %v905 = vadd.f32 %v904, 1.0
    %v906 = vrcp.pop %v905
    %v907 = vmul.f32 %v905, %v906
    %v908 = vsub.f32 1.0, %v907
    %v909 = vmul.f32 %v906, %v908
    %v910 = vadd.f32 %v906, %v909
    %vm911 = vweird.f32 %v905
    %vm912 = vweird.f32 %v906
    %vm913 = vmor %vm911, %vm912
    %v914 = vsel %vm913, %v906, %v910
    %v915 = vand.u32 2147483647, %v905
    %vm916 = vcmp.eq.f32.partialorder %v915, 8.507059e+37
    %v917 = vand.u32 %v905, 2147483648
    %v918 = vor.u32 1.1754944e-38, %v917
    %v919 = vsel %vm916, %v918, %v914
    %v920 = vmul.f32 1.0, %v919
    %v921 = vxor.u32 %v899, 2147483648
    %v922 = vmul.f32 %v921, 1.442695
    %v923 = vpow.pop %v922
    %v924 = vadd.f32 %v923, 1.0
    %v925 = vrcp.pop %v924
    %v926 = vmul.f32 %v924, %v925
    %v927 = vsub.f32 1.0, %v926
    %v928 = vmul.f32 %v925, %v927
    %v929 = vadd.f32 %v925, %v928
    %vm930 = vweird.f32 %v924
    %vm931 = vweird.f32 %v925
    %vm932 = vmor %vm930, %vm931
    %v933 = vsel %vm932, %v925, %v929
    %v934 = vand.u32 2147483647, %v924
    %vm935 = vcmp.eq.f32.partialorder %v934, 8.507059e+37
    %v936 = vand.u32 %v924, 2147483648
    %v937 = vor.u32 1.1754944e-38, %v936
    %v938 = vsel %vm935, %v937, %v933
    %v939 = vmul.f32 1.0, %v938
    %v940 = vtanh.pop %v900
    %v941 = vxor.u32 %v901, 2147483648
    %v942 = vmul.f32 %v941, 1.442695
    %v943 = vpow.pop %v942
    %v944 = vadd.f32 %v943, 1.0
    %v945 = vrcp.pop %v944
    %v946 = vmul.f32 %v944, %v945
    %v947 = vsub.f32 1.0, %v946
    %v948 = vmul.f32 %v945, %v947
    %v949 = vadd.f32 %v945, %v948
    %vm950 = vweird.f32 %v944
    %vm951 = vweird.f32 %v945
    %vm952 = vmor %vm950, %vm951
    %v953 = vsel %vm952, %v945, %v949
    %v954 = vand.u32 2147483647, %v944
    %vm955 = vcmp.eq.f32.partialorder %v954, 8.507059e+37
    %v956 = vand.u32 %v944, 2147483648
    %v957 = vor.u32 1.1754944e-38, %v956
    %v958 = vsel %vm955, %v957, %v953
    %v959 = vmul.f32 1.0, %v958
    %v960 = vmul.f32 %v939, %v646
    %v961 = vmul.f32 %v920, %v940
    %v962 = vadd.f32 %v960, %v961
    %v963 = vtanh.pop %v962
    %v964 = vmul.f32 %v959, %v963
    %v965 = vld [vmem:[#allocation2 + $0x40] sm:$0xff]
    %v966 = vld [vmem:[#allocation2 + $0x48] sm:$0xff]
    %v967 = vld [vmem:[#allocation2 + $0x50] sm:$0xff]
    %v968 = vld [vmem:[#allocation2 + $0x58] sm:$0xff]
    %v969 = vpack.c.bf16 %v964, %v964
    %970 = vmatpush.bf16.msra.mxu0 %v810
    %971 = vmatpush.bf16.msra.mxu0 %v806
    %972 = vmatpush.bf16.msra.mxu0 %v802
    %973 = vmatpush.bf16.msra.mxu0 %v798
    %974 = vmatpush.bf16.msra.mxu0 %v794
    %975 = vmatpush.bf16.msra.mxu0 %v790
    %976 = vmatpush.bf16.msra.mxu0 %v786
    %977 = vmatpush.bf16.msra.mxu0 %v782
    %978 = vmatmul.bf16.gmra.mxu0 %v969
    %v979 = vpop.f32.mrf.mxu0
    %v980 = vadd.f32 0.0, %v979
    %v981 = vpop.f32.mrf.mxu0
    %982 = vdwg.mxu0
    %983 = vmatpush.bf16.msra.mxu0 %v811
    %984 = vmatpush.bf16.msra.mxu0 %v807
    %985 = vmatpush.bf16.msra.mxu0 %v803
    %986 = vmatpush.bf16.msra.mxu0 %v799
    %987 = vmatpush.bf16.msra.mxu0 %v795
    %988 = vmatpush.bf16.msra.mxu0 %v791
    %989 = vmatpush.bf16.msra.mxu0 %v787
    %990 = vmatpush.bf16.msra.mxu0 %v783
    %991 = vmatmul.bf16.gmra.mxu0 %v969
    %v992 = vpop.f32.mrf.mxu0
    %v993 = vadd.f32 0.0, %v992
    %v994 = vpop.f32.mrf.mxu0
    %995 = vdwg.mxu0
    %996 = vmatpush.bf16.msra.mxu0 %v812
    %997 = vmatpush.bf16.msra.mxu0 %v808
    %998 = vmatpush.bf16.msra.mxu0 %v804
    %999 = vmatpush.bf16.msra.mxu0 %v800
    %1000 = vmatpush.bf16.msra.mxu0 %v796
    %1001 = vmatpush.bf16.msra.mxu0 %v792
    %1002 = vmatpush.bf16.msra.mxu0 %v788
    %1003 = vmatpush.bf16.msra.mxu0 %v784
    %1004 = vmatmul.bf16.gmra.mxu0 %v969
    %v1005 = vpop.f32.mrf.mxu0
    %v1006 = vadd.f32 0.0, %v1005
    %v1007 = vpop.f32.mrf.mxu0
    %1008 = vdwg.mxu0
    %1009 = vmatpush.bf16.msra.mxu0 %v813
    %1010 = vmatpush.bf16.msra.mxu0 %v809
    %1011 = vmatpush.bf16.msra.mxu0 %v805
    %1012 = vmatpush.bf16.msra.mxu0 %v801
    %1013 = vmatpush.bf16.msra.mxu0 %v797
    %1014 = vmatpush.bf16.msra.mxu0 %v793
    %1015 = vmatpush.bf16.msra.mxu0 %v789
    %1016 = vmatpush.bf16.msra.mxu0 %v785
    %1017 = vmatmul.bf16.gmra.mxu0 %v969
    %v1018 = vpop.f32.mrf.mxu0
    %v1019 = vadd.f32 0.0, %v1018
    %v1020 = vpop.f32.mrf.mxu0
    %1021 = vdwg.mxu0
    %v1022 = vadd.f32 %v965, %v980
    %v1023 = vadd.f32 %v966, %v993
    %v1024 = vadd.f32 %v967, %v1006
    %v1025 = vadd.f32 %v968, %v1019
    %v1026 = vxor.u32 %v1022, 2147483648
    %v1027 = vmul.f32 %v1026, 1.442695
    %v1028 = vpow.pop %v1027
    %v1029 = vadd.f32 %v1028, 1.0
    %v1030 = vrcp.pop %v1029
    %v1031 = vmul.f32 %v1029, %v1030
    %v1032 = vsub.f32 1.0, %v1031
    %v1033 = vmul.f32 %v1030, %v1032
    %v1034 = vadd.f32 %v1030, %v1033
    %vm1035 = vweird.f32 %v1029
    %vm1036 = vweird.f32 %v1030
    %vm1037 = vmor %vm1035, %vm1036
    %v1038 = vsel %vm1037, %v1030, %v1034
    %v1039 = vand.u32 2147483647, %v1029
    %vm1040 = vcmp.eq.f32.partialorder %v1039, 8.507059e+37
    %v1041 = vand.u32 %v1029, 2147483648
    %v1042 = vor.u32 1.1754944e-38, %v1041
    %v1043 = vsel %vm1040, %v1042, %v1038
    %v1044 = vmul.f32 1.0, %v1043
    %v1045 = vxor.u32 %v1023, 2147483648
    %v1046 = vmul.f32 %v1045, 1.442695
    %v1047 = vpow.pop %v1046
    %v1048 = vadd.f32 %v1047, 1.0
    %v1049 = vrcp.pop %v1048
    %v1050 = vmul.f32 %v1048, %v1049
    %v1051 = vsub.f32 1.0, %v1050
    %v1052 = vmul.f32 %v1049, %v1051
    %v1053 = vadd.f32 %v1049, %v1052
    %vm1054 = vweird.f32 %v1048
    %vm1055 = vweird.f32 %v1049
    %vm1056 = vmor %vm1054, %vm1055
    %v1057 = vsel %vm1056, %v1049, %v1053
    %v1058 = vand.u32 2147483647, %v1048
    %vm1059 = vcmp.eq.f32.partialorder %v1058, 8.507059e+37
    %v1060 = vand.u32 %v1048, 2147483648
    %v1061 = vor.u32 1.1754944e-38, %v1060
    %v1062 = vsel %vm1059, %v1061, %v1057
    %v1063 = vmul.f32 1.0, %v1062
    %v1064 = vtanh.pop %v1024
    %v1065 = vxor.u32 %v1025, 2147483648
    %v1066 = vmul.f32 %v1065, 1.442695
    %v1067 = vpow.pop %v1066
    %v1068 = vadd.f32 %v1067, 1.0
    %v1069 = vrcp.pop %v1068
    %v1070 = vmul.f32 %v1068, %v1069
    %v1071 = vsub.f32 1.0, %v1070
    %v1072 = vmul.f32 %v1069, %v1071
    %v1073 = vadd.f32 %v1069, %v1072
    %vm1074 = vweird.f32 %v1068
    %vm1075 = vweird.f32 %v1069
    %vm1076 = vmor %vm1074, %vm1075
    %v1077 = vsel %vm1076, %v1069, %v1073
    %v1078 = vand.u32 2147483647, %v1068
    %vm1079 = vcmp.eq.f32.partialorder %v1078, 8.507059e+37
    %v1080 = vand.u32 %v1068, 2147483648
    %v1081 = vor.u32 1.1754944e-38, %v1080
    %v1082 = vsel %vm1079, %v1081, %v1077
    %v1083 = vmul.f32 1.0, %v1082
    %v1084 = vmul.f32 %v1063, %v962
    %v1085 = vmul.f32 %v1044, %v1064
    %v1086 = vadd.f32 %v1084, %v1085
    %v1087 = vtanh.pop %v1086
    %v1088 = vmul.f32 %v1083, %v1087
    %v1089 = vld [vmem:[#allocation2 + $0x60] sm:$0xff]
    %v1090 = vld [vmem:[#allocation2 + $0x68] sm:$0xff]
    %v1091 = vld [vmem:[#allocation2 + $0x70] sm:$0xff]
    %v1092 = vld [vmem:[#allocation2 + $0x78] sm:$0xff]
    %v1093 = vpack.c.bf16 %v1088, %v1088
    %1094 = vmatpush.bf16.msra.mxu0 %v810
    %1095 = vmatpush.bf16.msra.mxu0 %v806
    %1096 = vmatpush.bf16.msra.mxu0 %v802
    %1097 = vmatpush.bf16.msra.mxu0 %v798
    %1098 = vmatpush.bf16.msra.mxu0 %v794
    %1099 = vmatpush.bf16.msra.mxu0 %v790
    %1100 = vmatpush.bf16.msra.mxu0 %v786
    %1101 = vmatpush.bf16.msra.mxu0 %v782
    %1102 = vmatmul.bf16.gmra.mxu0 %v1093
    %v1103 = vpop.f32.mrf.mxu0
    %v1104 = vadd.f32 0.0, %v1103
    %v1105 = vpop.f32.mrf.mxu0
    %1106 = vdwg.mxu0
    %1107 = vmatpush.bf16.msra.mxu0 %v811
    %1108 = vmatpush.bf16.msra.mxu0 %v807
    %1109 = vmatpush.bf16.msra.mxu0 %v803
    %1110 = vmatpush.bf16.msra.mxu0 %v799
    %1111 = vmatpush.bf16.msra.mxu0 %v795
    %1112 = vmatpush.bf16.msra.mxu0 %v791
    %1113 = vmatpush.bf16.msra.mxu0 %v787
    %1114 = vmatpush.bf16.msra.mxu0 %v783
    %1115 = vmatmul.bf16.gmra.mxu0 %v1093
    %v1116 = vpop.f32.mrf.mxu0
    %v1117 = vadd.f32 0.0, %v1116
    %v1118 = vpop.f32.mrf.mxu0
    %1119 = vdwg.mxu0
    %1120 = vmatpush.bf16.msra.mxu0 %v812
    %1121 = vmatpush.bf16.msra.mxu0 %v808
    %1122 = vmatpush.bf16.msra.mxu0 %v804
    %1123 = vmatpush.bf16.msra.mxu0 %v800
    %1124 = vmatpush.bf16.msra.mxu0 %v796
    %1125 = vmatpush.bf16.msra.mxu0 %v792
    %1126 = vmatpush.bf16.msra.mxu0 %v788
    %1127 = vmatpush.bf16.msra.mxu0 %v784
    %1128 = vmatmul.bf16.gmra.mxu0 %v1093
    %v1129 = vpop.f32.mrf.mxu0
    %v1130 = vadd.f32 0.0, %v1129
    %v1131 = vpop.f32.mrf.mxu0
    %1132 = vdwg.mxu0
    %1133 = vmatpush.bf16.msra.mxu0 %v813
    %1134 = vmatpush.bf16.msra.mxu0 %v809
    %1135 = vmatpush.bf16.msra.mxu0 %v805
    %1136 = vmatpush.bf16.msra.mxu0 %v801
    %1137 = vmatpush.bf16.msra.mxu0 %v797
    %1138 = vmatpush.bf16.msra.mxu0 %v793
    %1139 = vmatpush.bf16.msra.mxu0 %v789
    %1140 = vmatpush.bf16.msra.mxu0 %v785
    %1141 = vmatmul.bf16.gmra.mxu0 %v1093
    %v1142 = vpop.f32.mrf.mxu0
    %v1143 = vadd.f32 0.0, %v1142
    %v1144 = vpop.f32.mrf.mxu0
    %1145 = vdwg.mxu0
    %v1146 = vadd.f32 %v1089, %v1104
    %v1147 = vadd.f32 %v1090, %v1117
    %v1148 = vadd.f32 %v1091, %v1130
    %v1149 = vadd.f32 %v1092, %v1143
    %v1150 = vxor.u32 %v1146, 2147483648
    %v1151 = vmul.f32 %v1150, 1.442695
    %v1152 = vpow.pop %v1151
    %v1153 = vadd.f32 %v1152, 1.0
    %v1154 = vrcp.pop %v1153
    %v1155 = vmul.f32 %v1153, %v1154
    %v1156 = vsub.f32 1.0, %v1155
    %v1157 = vmul.f32 %v1154, %v1156
    %v1158 = vadd.f32 %v1154, %v1157
    %vm1159 = vweird.f32 %v1153
    %vm1160 = vweird.f32 %v1154
    %vm1161 = vmor %vm1159, %vm1160
    %v1162 = vsel %vm1161, %v1154, %v1158
    %v1163 = vand.u32 2147483647, %v1153
    %vm1164 = vcmp.eq.f32.partialorder %v1163, 8.507059e+37
    %v1165 = vand.u32 %v1153, 2147483648
    %v1166 = vor.u32 1.1754944e-38, %v1165
    %v1167 = vsel %vm1164, %v1166, %v1162
    %v1168 = vmul.f32 1.0, %v1167
    %v1169 = vxor.u32 %v1147, 2147483648
    %v1170 = vmul.f32 %v1169, 1.442695
    %v1171 = vpow.pop %v1170
    %v1172 = vadd.f32 %v1171, 1.0
    %v1173 = vrcp.pop %v1172
    %v1174 = vmul.f32 %v1172, %v1173
    %v1175 = vsub.f32 1.0, %v1174
    %v1176 = vmul.f32 %v1173, %v1175
    %v1177 = vadd.f32 %v1173, %v1176
    %vm1178 = vweird.f32 %v1172
    %vm1179 = vweird.f32 %v1173
    %vm1180 = vmor %vm1178, %vm1179
    %v1181 = vsel %vm1180, %v1173, %v1177
    %v1182 = vand.u32 2147483647, %v1172
    %vm1183 = vcmp.eq.f32.partialorder %v1182, 8.507059e+37
    %v1184 = vand.u32 %v1172, 2147483648
    %v1185 = vor.u32 1.1754944e-38, %v1184
    %v1186 = vsel %vm1183, %v1185, %v1181
    %v1187 = vmul.f32 1.0, %v1186
    %v1188 = vtanh.pop %v1148
    %v1189 = vxor.u32 %v1149, 2147483648
    %v1190 = vmul.f32 %v1189, 1.442695
    %v1191 = vpow.pop %v1190
    %v1192 = vadd.f32 %v1191, 1.0
    %v1193 = vrcp.pop %v1192
    %v1194 = vmul.f32 %v1192, %v1193
    %v1195 = vsub.f32 1.0, %v1194
    %v1196 = vmul.f32 %v1193, %v1195
    %v1197 = vadd.f32 %v1193, %v1196
    %vm1198 = vweird.f32 %v1192
    %vm1199 = vweird.f32 %v1193
    %vm1200 = vmor %vm1198, %vm1199
    %v1201 = vsel %vm1200, %v1193, %v1197
    %v1202 = vand.u32 2147483647, %v1192
    %vm1203 = vcmp.eq.f32.partialorder %v1202, 8.507059e+37
    %v1204 = vand.u32 %v1192, 2147483648
    %v1205 = vor.u32 1.1754944e-38, %v1204
    %v1206 = vsel %vm1203, %v1205, %v1201
    %v1207 = vmul.f32 1.0, %v1206
    %v1208 = vmul.f32 %v1187, %v1086
    %v1209 = vmul.f32 %v1168, %v1188
    %v1210 = vadd.f32 %v1208, %v1209
    %v1211 = vtanh.pop %v1210
    %v1212 = vmul.f32 %v1207, %v1211
    %v1213 = vld [vmem:[#allocation2 + $0x80] sm:$0xff]
    %v1214 = vld [vmem:[#allocation2 + $0x88] sm:$0xff]
    %v1215 = vld [vmem:[#allocation2 + $0x90] sm:$0xff]
    %v1216 = vld [vmem:[#allocation2 + $0x98] sm:$0xff]
    %v1217 = vpack.c.bf16 %v1212, %v1212
    %1218 = vmatpush.bf16.msra.mxu0 %v810
    %1219 = vmatpush.bf16.msra.mxu0 %v806
    %1220 = vmatpush.bf16.msra.mxu0 %v802
    %1221 = vmatpush.bf16.msra.mxu0 %v798
    %1222 = vmatpush.bf16.msra.mxu0 %v794
    %1223 = vmatpush.bf16.msra.mxu0 %v790
    %1224 = vmatpush.bf16.msra.mxu0 %v786
    %1225 = vmatpush.bf16.msra.mxu0 %v782
    %1226 = vmatmul.bf16.gmra.mxu0 %v1217
    %v1227 = vpop.f32.mrf.mxu0
    %v1228 = vadd.f32 0.0, %v1227
    %v1229 = vpop.f32.mrf.mxu0
    %1230 = vdwg.mxu0
    %1231 = vmatpush.bf16.msra.mxu0 %v811
    %1232 = vmatpush.bf16.msra.mxu0 %v807
    %1233 = vmatpush.bf16.msra.mxu0 %v803
    %1234 = vmatpush.bf16.msra.mxu0 %v799
    %1235 = vmatpush.bf16.msra.mxu0 %v795
    %1236 = vmatpush.bf16.msra.mxu0 %v791
    %1237 = vmatpush.bf16.msra.mxu0 %v787
    %1238 = vmatpush.bf16.msra.mxu0 %v783
    %1239 = vmatmul.bf16.gmra.mxu0 %v1217
    %v1240 = vpop.f32.mrf.mxu0
    %v1241 = vadd.f32 0.0, %v1240
    %v1242 = vpop.f32.mrf.mxu0
    %1243 = vdwg.mxu0
    %1244 = vmatpush.bf16.msra.mxu0 %v812
    %1245 = vmatpush.bf16.msra.mxu0 %v808
    %1246 = vmatpush.bf16.msra.mxu0 %v804
    %1247 = vmatpush.bf16.msra.mxu0 %v800
    %1248 = vmatpush.bf16.msra.mxu0 %v796
    %1249 = vmatpush.bf16.msra.mxu0 %v792
    %1250 = vmatpush.bf16.msra.mxu0 %v788
    %1251 = vmatpush.bf16.msra.mxu0 %v784
    %1252 = vmatmul.bf16.gmra.mxu0 %v1217
    %v1253 = vpop.f32.mrf.mxu0
    %v1254 = vadd.f32 0.0, %v1253
    %v1255 = vpop.f32.mrf.mxu0
    %1256 = vdwg.mxu0
    %1257 = vmatpush.bf16.msra.mxu0 %v813
    %1258 = vmatpush.bf16.msra.mxu0 %v809
    %1259 = vmatpush.bf16.msra.mxu0 %v805
    %1260 = vmatpush.bf16.msra.mxu0 %v801
    %1261 = vmatpush.bf16.msra.mxu0 %v797
    %1262 = vmatpush.bf16.msra.mxu0 %v793
    %1263 = vmatpush.bf16.msra.mxu0 %v789
    %1264 = vmatpush.bf16.msra.mxu0 %v785
    %1265 = vmatmul.bf16.gmra.mxu0 %v1217
    %v1266 = vpop.f32.mrf.mxu0
    %v1267 = vadd.f32 0.0, %v1266
    %v1268 = vpop.f32.mrf.mxu0
    %1269 = vdwg.mxu0
    %v1270 = vadd.f32 %v1213, %v1228
    %v1271 = vadd.f32 %v1214, %v1241
    %v1272 = vadd.f32 %v1215, %v1254
    %v1273 = vadd.f32 %v1216, %v1267
    %v1274 = vxor.u32 %v1270, 2147483648
    %v1275 = vmul.f32 %v1274, 1.442695
    %v1276 = vpow.pop %v1275
    %v1277 = vadd.f32 %v1276, 1.0
    %v1278 = vrcp.pop %v1277
    %v1279 = vmul.f32 %v1277, %v1278
    %v1280 = vsub.f32 1.0, %v1279
    %v1281 = vmul.f32 %v1278, %v1280
    %v1282 = vadd.f32 %v1278, %v1281
    %vm1283 = vweird.f32 %v1277
    %vm1284 = vweird.f32 %v1278
    %vm1285 = vmor %vm1283, %vm1284
    %v1286 = vsel %vm1285, %v1278, %v1282
    %v1287 = vand.u32 2147483647, %v1277
    %vm1288 = vcmp.eq.f32.partialorder %v1287, 8.507059e+37
    %v1289 = vand.u32 %v1277, 2147483648
    %v1290 = vor.u32 1.1754944e-38, %v1289
    %v1291 = vsel %vm1288, %v1290, %v1286
    %v1292 = vmul.f32 1.0, %v1291
    %v1293 = vxor.u32 %v1271, 2147483648
    %v1294 = vmul.f32 %v1293, 1.442695
    %v1295 = vpow.pop %v1294
    %v1296 = vadd.f32 %v1295, 1.0
    %v1297 = vrcp.pop %v1296
    %v1298 = vmul.f32 %v1296, %v1297
    %v1299 = vsub.f32 1.0, %v1298
    %v1300 = vmul.f32 %v1297, %v1299
    %v1301 = vadd.f32 %v1297, %v1300
    %vm1302 = vweird.f32 %v1296
    %vm1303 = vweird.f32 %v1297
    %vm1304 = vmor %vm1302, %vm1303
    %v1305 = vsel %vm1304, %v1297, %v1301
    %v1306 = vand.u32 2147483647, %v1296
    %vm1307 = vcmp.eq.f32.partialorder %v1306, 8.507059e+37
    %v1308 = vand.u32 %v1296, 2147483648
    %v1309 = vor.u32 1.1754944e-38, %v1308
    %v1310 = vsel %vm1307, %v1309, %v1305
    %v1311 = vmul.f32 1.0, %v1310
    %v1312 = vtanh.pop %v1272
    %v1313 = vxor.u32 %v1273, 2147483648
    %v1314 = vmul.f32 %v1313, 1.442695
    %v1315 = vpow.pop %v1314
    %v1316 = vadd.f32 %v1315, 1.0
    %v1317 = vrcp.pop %v1316
    %v1318 = vmul.f32 %v1316, %v1317
    %v1319 = vsub.f32 1.0, %v1318
    %v1320 = vmul.f32 %v1317, %v1319
    %v1321 = vadd.f32 %v1317, %v1320
    %vm1322 = vweird.f32 %v1316
    %vm1323 = vweird.f32 %v1317
    %vm1324 = vmor %vm1322, %vm1323
    %v1325 = vsel %vm1324, %v1317, %v1321
    %v1326 = vand.u32 2147483647, %v1316
    %vm1327 = vcmp.eq.f32.partialorder %v1326, 8.507059e+37
    %v1328 = vand.u32 %v1316, 2147483648
    %v1329 = vor.u32 1.1754944e-38, %v1328
    %v1330 = vsel %vm1327, %v1329, %v1325
    %v1331 = vmul.f32 1.0, %v1330
    %v1332 = vmul.f32 %v1311, %v1210
    %v1333 = vmul.f32 %v1292, %v1312
    %v1334 = vadd.f32 %v1332, %v1333
    %v1335 = vtanh.pop %v1334
    %v1336 = vmul.f32 %v1331, %v1335
    %v1337 = vld [vmem:[#allocation2 + $0xa0] sm:$0xff]
    %v1338 = vld [vmem:[#allocation2 + $0xa8] sm:$0xff]
    %v1339 = vld [vmem:[#allocation2 + $0xb0] sm:$0xff]
    %v1340 = vld [vmem:[#allocation2 + $0xb8] sm:$0xff]
    %v1341 = vpack.c.bf16 %v1336, %v1336
    %1342 = vmatpush.bf16.msra.mxu0 %v810
    %1343 = vmatpush.bf16.msra.mxu0 %v806
    %1344 = vmatpush.bf16.msra.mxu0 %v802
    %1345 = vmatpush.bf16.msra.mxu0 %v798
    %1346 = vmatpush.bf16.msra.mxu0 %v794
    %1347 = vmatpush.bf16.msra.mxu0 %v790
    %1348 = vmatpush.bf16.msra.mxu0 %v786
    %1349 = vmatpush.bf16.msra.mxu0 %v782
    %1350 = vmatmul.bf16.gmra.mxu0 %v1341
    %v1351 = vpop.f32.mrf.mxu0
    %v1352 = vadd.f32 0.0, %v1351
    %v1353 = vpop.f32.mrf.mxu0
    %1354 = vdwg.mxu0
    %1355 = vmatpush.bf16.msra.mxu0 %v811
    %1356 = vmatpush.bf16.msra.mxu0 %v807
    %1357 = vmatpush.bf16.msra.mxu0 %v803
    %1358 = vmatpush.bf16.msra.mxu0 %v799
    %1359 = vmatpush.bf16.msra.mxu0 %v795
    %1360 = vmatpush.bf16.msra.mxu0 %v791
    %1361 = vmatpush.bf16.msra.mxu0 %v787
    %1362 = vmatpush.bf16.msra.mxu0 %v783
    %1363 = vmatmul.bf16.gmra.mxu0 %v1341
    %v1364 = vpop.f32.mrf.mxu0
    %v1365 = vadd.f32 0.0, %v1364
    %v1366 = vpop.f32.mrf.mxu0
    %1367 = vdwg.mxu0
    %1368 = vmatpush.bf16.msra.mxu0 %v812
    %1369 = vmatpush.bf16.msra.mxu0 %v808
    %1370 = vmatpush.bf16.msra.mxu0 %v804
    %1371 = vmatpush.bf16.msra.mxu0 %v800
    %1372 = vmatpush.bf16.msra.mxu0 %v796
    %1373 = vmatpush.bf16.msra.mxu0 %v792
    %1374 = vmatpush.bf16.msra.mxu0 %v788
    %1375 = vmatpush.bf16.msra.mxu0 %v784
    %1376 = vmatmul.bf16.gmra.mxu0 %v1341
    %v1377 = vpop.f32.mrf.mxu0
    %v1378 = vadd.f32 0.0, %v1377
    %v1379 = vpop.f32.mrf.mxu0
    %1380 = vdwg.mxu0
    %1381 = vmatpush.bf16.msra.mxu0 %v813
    %1382 = vmatpush.bf16.msra.mxu0 %v809
    %1383 = vmatpush.bf16.msra.mxu0 %v805
    %1384 = vmatpush.bf16.msra.mxu0 %v801
    %1385 = vmatpush.bf16.msra.mxu0 %v797
    %1386 = vmatpush.bf16.msra.mxu0 %v793
    %1387 = vmatpush.bf16.msra.mxu0 %v789
    %1388 = vmatpush.bf16.msra.mxu0 %v785
    %1389 = vmatmul.bf16.gmra.mxu0 %v1341
    %v1390 = vpop.f32.mrf.mxu0
    %v1391 = vadd.f32 0.0, %v1390
    %v1392 = vpop.f32.mrf.mxu0
    %1393 = vdwg.mxu0
    %v1394 = vadd.f32 %v1337, %v1352
    %v1395 = vadd.f32 %v1338, %v1365
    %v1396 = vadd.f32 %v1339, %v1378
    %v1397 = vadd.f32 %v1340, %v1391
    %v1398 = vxor.u32 %v1394, 2147483648
    %v1399 = vmul.f32 %v1398, 1.442695
    %v1400 = vpow.pop %v1399
    %v1401 = vadd.f32 %v1400, 1.0
    %v1402 = vrcp.pop %v1401
    %v1403 = vmul.f32 %v1401, %v1402
    %v1404 = vsub.f32 1.0, %v1403
    %v1405 = vmul.f32 %v1402, %v1404
    %v1406 = vadd.f32 %v1402, %v1405
    %vm1407 = vweird.f32 %v1401
    %vm1408 = vweird.f32 %v1402
    %vm1409 = vmor %vm1407, %vm1408
    %v1410 = vsel %vm1409, %v1402, %v1406
    %v1411 = vand.u32 2147483647, %v1401
    %vm1412 = vcmp.eq.f32.partialorder %v1411, 8.507059e+37
    %v1413 = vand.u32 %v1401, 2147483648
    %v1414 = vor.u32 1.1754944e-38, %v1413
    %v1415 = vsel %vm1412, %v1414, %v1410
    %v1416 = vmul.f32 1.0, %v1415
    %v1417 = vxor.u32 %v1395, 2147483648
    %v1418 = vmul.f32 %v1417, 1.442695
    %v1419 = vpow.pop %v1418
    %v1420 = vadd.f32 %v1419, 1.0
    %v1421 = vrcp.pop %v1420
    %v1422 = vmul.f32 %v1420, %v1421
    %v1423 = vsub.f32 1.0, %v1422
    %v1424 = vmul.f32 %v1421, %v1423
    %v1425 = vadd.f32 %v1421, %v1424
    %vm1426 = vweird.f32 %v1420
    %vm1427 = vweird.f32 %v1421
    %vm1428 = vmor %vm1426, %vm1427
    %v1429 = vsel %vm1428, %v1421, %v1425
    %v1430 = vand.u32 2147483647, %v1420
    %vm1431 = vcmp.eq.f32.partialorder %v1430, 8.507059e+37
    %v1432 = vand.u32 %v1420, 2147483648
    %v1433 = vor.u32 1.1754944e-38, %v1432
    %v1434 = vsel %vm1431, %v1433, %v1429
    %v1435 = vmul.f32 1.0, %v1434
    %v1436 = vtanh.pop %v1396
    %v1437 = vxor.u32 %v1397, 2147483648
    %v1438 = vmul.f32 %v1437, 1.442695
    %v1439 = vpow.pop %v1438
    %v1440 = vadd.f32 %v1439, 1.0
    %v1441 = vrcp.pop %v1440
    %v1442 = vmul.f32 %v1440, %v1441
    %v1443 = vsub.f32 1.0, %v1442
    %v1444 = vmul.f32 %v1441, %v1443
    %v1445 = vadd.f32 %v1441, %v1444
    %vm1446 = vweird.f32 %v1440
    %vm1447 = vweird.f32 %v1441
    %vm1448 = vmor %vm1446, %vm1447
    %v1449 = vsel %vm1448, %v1441, %v1445
    %v1450 = vand.u32 2147483647, %v1440
    %vm1451 = vcmp.eq.f32.partialorder %v1450, 8.507059e+37
    %v1452 = vand.u32 %v1440, 2147483648
    %v1453 = vor.u32 1.1754944e-38, %v1452
    %v1454 = vsel %vm1451, %v1453, %v1449
    %v1455 = vmul.f32 1.0, %v1454
    %v1456 = vmul.f32 %v1435, %v1334
    %v1457 = vmul.f32 %v1416, %v1436
    %v1458 = vadd.f32 %v1456, %v1457
    %v1459 = vtanh.pop %v1458
    %v1460 = vmul.f32 %v1455, %v1459
    %v1461 = vld [vmem:[#allocation2 + $0xc0] sm:$0xff]
    %v1462 = vld [vmem:[#allocation2 + $0xc8] sm:$0xff]
    %v1463 = vld [vmem:[#allocation2 + $0xd0] sm:$0xff]
    %v1464 = vld [vmem:[#allocation2 + $0xd8] sm:$0xff]
    %v1465 = vpack.c.bf16 %v1460, %v1460
    %1466 = vmatpush.bf16.msra.mxu0 %v810
    %1467 = vmatpush.bf16.msra.mxu0 %v806
    %1468 = vmatpush.bf16.msra.mxu0 %v802
    %1469 = vmatpush.bf16.msra.mxu0 %v798
    %1470 = vmatpush.bf16.msra.mxu0 %v794
    %1471 = vmatpush.bf16.msra.mxu0 %v790
    %1472 = vmatpush.bf16.msra.mxu0 %v786
    %1473 = vmatpush.bf16.msra.mxu0 %v782
    %1474 = vmatmul.bf16.gmra.mxu0 %v1465
    %v1475 = vpop.f32.mrf.mxu0
    %v1476 = vadd.f32 0.0, %v1475
    %v1477 = vpop.f32.mrf.mxu0
    %1478 = vdwg.mxu0
    %1479 = vmatpush.bf16.msra.mxu0 %v811
    %1480 = vmatpush.bf16.msra.mxu0 %v807
    %1481 = vmatpush.bf16.msra.mxu0 %v803
    %1482 = vmatpush.bf16.msra.mxu0 %v799
    %1483 = vmatpush.bf16.msra.mxu0 %v795
    %1484 = vmatpush.bf16.msra.mxu0 %v791
    %1485 = vmatpush.bf16.msra.mxu0 %v787
    %1486 = vmatpush.bf16.msra.mxu0 %v783
    %1487 = vmatmul.bf16.gmra.mxu0 %v1465
    %v1488 = vpop.f32.mrf.mxu0
    %v1489 = vadd.f32 0.0, %v1488
    %v1490 = vpop.f32.mrf.mxu0
    %1491 = vdwg.mxu0
    %1492 = vmatpush.bf16.msra.mxu0 %v812
    %1493 = vmatpush.bf16.msra.mxu0 %v808
    %1494 = vmatpush.bf16.msra.mxu0 %v804
    %1495 = vmatpush.bf16.msra.mxu0 %v800
    %1496 = vmatpush.bf16.msra.mxu0 %v796
    %1497 = vmatpush.bf16.msra.mxu0 %v792
    %1498 = vmatpush.bf16.msra.mxu0 %v788
    %1499 = vmatpush.bf16.msra.mxu0 %v784
    %1500 = vmatmul.bf16.gmra.mxu0 %v1465
    %v1501 = vpop.f32.mrf.mxu0
    %v1502 = vadd.f32 0.0, %v1501
    %v1503 = vpop.f32.mrf.mxu0
    %1504 = vdwg.mxu0
    %1505 = vmatpush.bf16.msra.mxu0 %v813
    %1506 = vmatpush.bf16.msra.mxu0 %v809
    %1507 = vmatpush.bf16.msra.mxu0 %v805
    %1508 = vmatpush.bf16.msra.mxu0 %v801
    %1509 = vmatpush.bf16.msra.mxu0 %v797
    %1510 = vmatpush.bf16.msra.mxu0 %v793
    %1511 = vmatpush.bf16.msra.mxu0 %v789
    %1512 = vmatpush.bf16.msra.mxu0 %v785
    %1513 = vmatmul.bf16.gmra.mxu0 %v1465
    %v1514 = vpop.f32.mrf.mxu0
    %v1515 = vadd.f32 0.0, %v1514
    %v1516 = vpop.f32.mrf.mxu0
    %1517 = vdwg.mxu0
    %v1518 = vadd.f32 %v1461, %v1476
    %v1519 = vadd.f32 %v1462, %v1489
    %v1520 = vadd.f32 %v1463, %v1502
    %v1521 = vadd.f32 %v1464, %v1515
    %v1522 = vxor.u32 %v1518, 2147483648
    %v1523 = vmul.f32 %v1522, 1.442695
    %v1524 = vpow.pop %v1523
    %v1525 = vadd.f32 %v1524, 1.0
    %v1526 = vrcp.pop %v1525
    %v1527 = vmul.f32 %v1525, %v1526
    %v1528 = vsub.f32 1.0, %v1527
    %v1529 = vmul.f32 %v1526, %v1528
    %v1530 = vadd.f32 %v1526, %v1529
    %vm1531 = vweird.f32 %v1525
    %vm1532 = vweird.f32 %v1526
    %vm1533 = vmor %vm1531, %vm1532
    %v1534 = vsel %vm1533, %v1526, %v1530
    %v1535 = vand.u32 2147483647, %v1525
    %vm1536 = vcmp.eq.f32.partialorder %v1535, 8.507059e+37
    %v1537 = vand.u32 %v1525, 2147483648
    %v1538 = vor.u32 1.1754944e-38, %v1537
    %v1539 = vsel %vm1536, %v1538, %v1534
    %v1540 = vmul.f32 1.0, %v1539
    %v1541 = vxor.u32 %v1519, 2147483648
    %v1542 = vmul.f32 %v1541, 1.442695
    %v1543 = vpow.pop %v1542
    %v1544 = vadd.f32 %v1543, 1.0
    %v1545 = vrcp.pop %v1544
    %v1546 = vmul.f32 %v1544, %v1545
    %v1547 = vsub.f32 1.0, %v1546
    %v1548 = vmul.f32 %v1545, %v1547
    %v1549 = vadd.f32 %v1545, %v1548
    %vm1550 = vweird.f32 %v1544
    %vm1551 = vweird.f32 %v1545
    %vm1552 = vmor %vm1550, %vm1551
    %v1553 = vsel %vm1552, %v1545, %v1549
    %v1554 = vand.u32 2147483647, %v1544
    %vm1555 = vcmp.eq.f32.partialorder %v1554, 8.507059e+37
    %v1556 = vand.u32 %v1544, 2147483648
    %v1557 = vor.u32 1.1754944e-38, %v1556
    %v1558 = vsel %vm1555, %v1557, %v1553
    %v1559 = vmul.f32 1.0, %v1558
    %v1560 = vtanh.pop %v1520
    %v1561 = vxor.u32 %v1521, 2147483648
    %v1562 = vmul.f32 %v1561, 1.442695
    %v1563 = vpow.pop %v1562
    %v1564 = vadd.f32 %v1563, 1.0
    %v1565 = vrcp.pop %v1564
    %v1566 = vmul.f32 %v1564, %v1565
    %v1567 = vsub.f32 1.0, %v1566
    %v1568 = vmul.f32 %v1565, %v1567
    %v1569 = vadd.f32 %v1565, %v1568
    %vm1570 = vweird.f32 %v1564
    %vm1571 = vweird.f32 %v1565
    %vm1572 = vmor %vm1570, %vm1571
    %v1573 = vsel %vm1572, %v1565, %v1569
    %v1574 = vand.u32 2147483647, %v1564
    %vm1575 = vcmp.eq.f32.partialorder %v1574, 8.507059e+37
    %v1576 = vand.u32 %v1564, 2147483648
    %v1577 = vor.u32 1.1754944e-38, %v1576
    %v1578 = vsel %vm1575, %v1577, %v1573
    %v1579 = vmul.f32 1.0, %v1578
    %v1580 = vmul.f32 %v1559, %v1458
    %v1581 = vmul.f32 %v1540, %v1560
    %v1582 = vadd.f32 %v1580, %v1581
    %v1583 = vtanh.pop %v1582
    %v1584 = vmul.f32 %v1579, %v1583
    %v1585 = vld [vmem:[#allocation2 + $0xe0] sm:$0xff]
    %v1586 = vld [vmem:[#allocation2 + $0xe8] sm:$0xff]
    %v1587 = vld [vmem:[#allocation2 + $0xf0] sm:$0xff]
    %v1588 = vld [vmem:[#allocation2 + $0xf8] sm:$0xff]
    %v1589 = vpack.c.bf16 %v1584, %v1584
    %1590 = vmatpush.bf16.msra.mxu0 %v810
    %1591 = vmatpush.bf16.msra.mxu0 %v806
    %1592 = vmatpush.bf16.msra.mxu0 %v802
    %1593 = vmatpush.bf16.msra.mxu0 %v798
    %1594 = vmatpush.bf16.msra.mxu0 %v794
    %1595 = vmatpush.bf16.msra.mxu0 %v790
    %1596 = vmatpush.bf16.msra.mxu0 %v786
    %1597 = vmatpush.bf16.msra.mxu0 %v782
    %1598 = vmatmul.bf16.gmra.mxu0 %v1589
    %v1599 = vpop.f32.mrf.mxu0
    %v1600 = vadd.f32 0.0, %v1599
    %v1601 = vpop.f32.mrf.mxu0
    %1602 = vdwg.mxu0
    %1603 = vmatpush.bf16.msra.mxu0 %v811
    %1604 = vmatpush.bf16.msra.mxu0 %v807
    %1605 = vmatpush.bf16.msra.mxu0 %v803
    %1606 = vmatpush.bf16.msra.mxu0 %v799
    %1607 = vmatpush.bf16.msra.mxu0 %v795
    %1608 = vmatpush.bf16.msra.mxu0 %v791
    %1609 = vmatpush.bf16.msra.mxu0 %v787
    %1610 = vmatpush.bf16.msra.mxu0 %v783
    %1611 = vmatmul.bf16.gmra.mxu0 %v1589
    %v1612 = vpop.f32.mrf.mxu0
    %v1613 = vadd.f32 0.0, %v1612
    %v1614 = vpop.f32.mrf.mxu0
    %1615 = vdwg.mxu0
    %1616 = vmatpush.bf16.msra.mxu0 %v812
    %1617 = vmatpush.bf16.msra.mxu0 %v808
    %1618 = vmatpush.bf16.msra.mxu0 %v804
    %1619 = vmatpush.bf16.msra.mxu0 %v800
    %1620 = vmatpush.bf16.msra.mxu0 %v796
    %1621 = vmatpush.bf16.msra.mxu0 %v792
    %1622 = vmatpush.bf16.msra.mxu0 %v788
    %1623 = vmatpush.bf16.msra.mxu0 %v784
    %1624 = vmatmul.bf16.gmra.mxu0 %v1589
    %v1625 = vpop.f32.mrf.mxu0
    %v1626 = vadd.f32 0.0, %v1625
    %v1627 = vpop.f32.mrf.mxu0
    %1628 = vdwg.mxu0
    %1629 = vmatpush.bf16.msra.mxu0 %v813
    %1630 = vmatpush.bf16.msra.mxu0 %v809
    %1631 = vmatpush.bf16.msra.mxu0 %v805
    %1632 = vmatpush.bf16.msra.mxu0 %v801
    %1633 = vmatpush.bf16.msra.mxu0 %v797
    %1634 = vmatpush.bf16.msra.mxu0 %v793
    %1635 = vmatpush.bf16.msra.mxu0 %v789
    %1636 = vmatpush.bf16.msra.mxu0 %v785
    %1637 = vmatmul.bf16.gmra.mxu0 %v1589
    %v1638 = vpop.f32.mrf.mxu0
    %v1639 = vadd.f32 0.0, %v1638
    %v1640 = vpop.f32.mrf.mxu0
    %1641 = vdwg.mxu0
    %v1642 = vadd.f32 %v1585, %v1600
    %v1643 = vadd.f32 %v1586, %v1613
    %v1644 = vadd.f32 %v1587, %v1626
    %v1645 = vadd.f32 %v1588, %v1639
    %v1646 = vxor.u32 %v1642, 2147483648
    %v1647 = vmul.f32 %v1646, 1.442695
    %v1648 = vpow.pop %v1647
    %v1649 = vadd.f32 %v1648, 1.0
    %v1650 = vrcp.pop %v1649
    %v1651 = vmul.f32 %v1649, %v1650
    %v1652 = vsub.f32 1.0, %v1651
    %v1653 = vmul.f32 %v1650, %v1652
    %v1654 = vadd.f32 %v1650, %v1653
    %vm1655 = vweird.f32 %v1649
    %vm1656 = vweird.f32 %v1650
    %vm1657 = vmor %vm1655, %vm1656
    %v1658 = vsel %vm1657, %v1650, %v1654
    %v1659 = vand.u32 2147483647, %v1649
    %vm1660 = vcmp.eq.f32.partialorder %v1659, 8.507059e+37
    %v1661 = vand.u32 %v1649, 2147483648
    %v1662 = vor.u32 1.1754944e-38, %v1661
    %v1663 = vsel %vm1660, %v1662, %v1658
    %v1664 = vmul.f32 1.0, %v1663
    %v1665 = vxor.u32 %v1643, 2147483648
    %v1666 = vmul.f32 %v1665, 1.442695
    %v1667 = vpow.pop %v1666
    %v1668 = vadd.f32 %v1667, 1.0
    %v1669 = vrcp.pop %v1668
    %v1670 = vmul.f32 %v1668, %v1669
    %v1671 = vsub.f32 1.0, %v1670
    %v1672 = vmul.f32 %v1669, %v1671
    %v1673 = vadd.f32 %v1669, %v1672
    %vm1674 = vweird.f32 %v1668
    %vm1675 = vweird.f32 %v1669
    %vm1676 = vmor %vm1674, %vm1675
    %v1677 = vsel %vm1676, %v1669, %v1673
    %v1678 = vand.u32 2147483647, %v1668
    %vm1679 = vcmp.eq.f32.partialorder %v1678, 8.507059e+37
    %v1680 = vand.u32 %v1668, 2147483648
    %v1681 = vor.u32 1.1754944e-38, %v1680
    %v1682 = vsel %vm1679, %v1681, %v1677
    %v1683 = vmul.f32 1.0, %v1682
    %v1684 = vtanh.pop %v1644
    %v1685 = vxor.u32 %v1645, 2147483648
    %v1686 = vmul.f32 %v1685, 1.442695
    %v1687 = vpow.pop %v1686
    %v1688 = vadd.f32 %v1687, 1.0
    %v1689 = vrcp.pop %v1688
    %v1690 = vmul.f32 %v1688, %v1689
    %v1691 = vsub.f32 1.0, %v1690
    %v1692 = vmul.f32 %v1689, %v1691
    %v1693 = vadd.f32 %v1689, %v1692
    %vm1694 = vweird.f32 %v1688
    %vm1695 = vweird.f32 %v1689
    %vm1696 = vmor %vm1694, %vm1695
    %v1697 = vsel %vm1696, %v1689, %v1693
    %v1698 = vand.u32 2147483647, %v1688
    %vm1699 = vcmp.eq.f32.partialorder %v1698, 8.507059e+37
    %v1700 = vand.u32 %v1688, 2147483648
    %v1701 = vor.u32 1.1754944e-38, %v1700
    %v1702 = vsel %vm1699, %v1701, %v1697
    %v1703 = vmul.f32 1.0, %v1702
    %v1704 = vmul.f32 %v1683, %v1582
    %v1705 = vmul.f32 %v1664, %v1684
    %v1706 = vadd.f32 %v1704, %v1705
    %v1707 = vtanh.pop %v1706
    %v1708 = vmul.f32 %v1703, %v1707
    %v1709 = vmul.f32 %v648, %v1708
    %1710 = vadd.xlane.f32.xlu0 %v1709
    %v1711 = vpop.xlane.xlu0 %1710
    %v1712 = vmul.f32 %v964, %v1708
    %1713 = vadd.xlane.f32.xlu0 %v1712
    %v1714 = vpop.xlane.xlu0 %1713
    %v1715 = vmul.f32 %v1088, %v1708
    %1716 = vadd.xlane.f32.xlu0 %v1715
    %v1717 = vpop.xlane.xlu0 %1716
    %v1718 = vmul.f32 %v1212, %v1708
    %1719 = vadd.xlane.f32.xlu0 %v1718
    %v1720 = vpop.xlane.xlu0 %1719
    %v1721 = vmul.f32 %v1336, %v1708
    %1722 = vadd.xlane.f32.xlu0 %v1721
    %v1723 = vpop.xlane.xlu0 %1722
    %v1724 = vmul.f32 %v1460, %v1708
    %1725 = vadd.xlane.f32.xlu0 %v1724
    %v1726 = vpop.xlane.xlu0 %1725
    %v1727 = vmul.f32 %v1584, %v1708
    %1728 = vadd.xlane.f32.xlu0 %v1727
    %v1729 = vpop.xlane.xlu0 %1728
    %v1730 = vmul.f32 %v1708, %v1708
    %1731 = vadd.xlane.f32.xlu0 %v1730
    %v1732 = vpop.xlane.xlu0 %1731
    %v1733 = vmax.f32 %v1711, %v1714
    %v1734 = vmax.f32 %v1733, %v1717
    %v1735 = vmax.f32 %v1734, %v1720
    %v1736 = vmax.f32 %v1735, %v1723
    %v1737 = vmax.f32 %v1736, %v1726
    %v1738 = vmax.f32 %v1737, %v1729
    %v1739 = vmax.f32 %v1738, %v1732
    %v1740 = vsub.f32 %v1711, %v1739
    %v1741 = vmul.f32 %v1740, 1.442695
    %v1742 = vpow.pop %v1741
    %v1743 = vsub.f32 %v1714, %v1739
    %v1744 = vmul.f32 %v1743, 1.442695
    %v1745 = vpow.pop %v1744
    %v1746 = vsub.f32 %v1717, %v1739
    %v1747 = vmul.f32 %v1746, 1.442695
    %v1748 = vpow.pop %v1747
    %v1749 = vsub.f32 %v1720, %v1739
    %v1750 = vmul.f32 %v1749, 1.442695
    %v1751 = vpow.pop %v1750
    %v1752 = vsub.f32 %v1723, %v1739
    %v1753 = vmul.f32 %v1752, 1.442695
    %v1754 = vpow.pop %v1753
    %v1755 = vsub.f32 %v1726, %v1739
    %v1756 = vmul.f32 %v1755, 1.442695
    %v1757 = vpow.pop %v1756
    %v1758 = vsub.f32 %v1729, %v1739
    %v1759 = vmul.f32 %v1758, 1.442695
    %v1760 = vpow.pop %v1759
    %v1761 = vsub.f32 %v1732, %v1739
    %v1762 = vmul.f32 %v1761, 1.442695
    %v1763 = vpow.pop %v1762
    %v1764 = vadd.f32 %v1742, %v1745
    %v1765 = vadd.f32 %v1764, %v1748
    %v1766 = vadd.f32 %v1765, %v1751
    %v1767 = vadd.f32 %v1766, %v1754
    %v1768 = vadd.f32 %v1767, %v1757
    %v1769 = vadd.f32 %v1768, %v1760
    %v1770 = vadd.f32 %v1769, %v1763
    %v1771 = vrcp.pop %v1770
    %v1772 = vmul.f32 %v1742, %v648
    %v1773 = vmul.f32 %v1745, %v964
    %v1774 = vadd.f32 %v1772, %v1773
    %v1775 = vmul.f32 %v1748, %v1088
    %v1776 = vadd.f32 %v1774, %v1775
    %v1777 = vmul.f32 %v1751, %v1212
    %v1778 = vadd.f32 %v1776, %v1777
    %v1779 = vmul.f32 %v1754, %v1336
    %v1780 = vadd.f32 %v1778, %v1779
    %v1781 = vmul.f32 %v1757, %v1460
    %v1782 = vadd.f32 %v1780, %v1781
    %v1783 = vmul.f32 %v1760, %v1584
    %v1784 = vadd.f32 %v1782, %v1783
    %v1785 = vmul.f32 %v1763, %v1708
    %v1786 = vadd.f32 %v1784, %v1785
    %v1787 = vmul.f32 %v1786, %v1771
    %v1788 = vpack.c.bf16 %v1787, %v1787
    %v1789 = vld [vmem:[#allocation7] sm:$0xf]
    %v1790 = vld [vmem:[#allocation7 + $0x4] sm:$0xf]
    %v1791 = vld [vmem:[#allocation7 + $0x8] sm:$0xf]
    %v1792 = vld [vmem:[#allocation7 + $0xc] sm:$0xf]
    %v1793 = vld [vmem:[#allocation7 + $0x10] sm:$0xf]
    %v1794 = vld [vmem:[#allocation7 + $0x14] sm:$0xf]
    %v1795 = vld [vmem:[#allocation7 + $0x18] sm:$0xf]
    %v1796 = vld [vmem:[#allocation7 + $0x1c] sm:$0xf]
    %v1797 = vld [vmem:[#allocation7 + $0x20] sm:$0xf]
    %v1798 = vld [vmem:[#allocation7 + $0x24] sm:$0xf]
    %v1799 = vld [vmem:[#allocation7 + $0x28] sm:$0xf]
    %v1800 = vld [vmem:[#allocation7 + $0x2c] sm:$0xf]
    %v1801 = vld [vmem:[#allocation7 + $0x30] sm:$0xf]
    %v1802 = vld [vmem:[#allocation7 + $0x34] sm:$0xf]
    %v1803 = vld [vmem:[#allocation7 + $0x38] sm:$0xf]
    %v1804 = vld [vmem:[#allocation7 + $0x3c] sm:$0xf]
    %v1805 = vld [vmem:[%s6] sm:$0x1]
    %v1807 = vperm.slane %v1805, 0
    %v1825 = vunpack.c.l.b16 %v1789
    %v1826 = vunpack.c.l.b16 %v1790
    %v1827 = vunpack.c.l.b16 %v1791
    %v1828 = vunpack.c.l.b16 %v1792
    %v1829 = vunpack.c.l.b16 %v1793
    %v1830 = vunpack.c.l.b16 %v1794
    %v1831 = vunpack.c.l.b16 %v1795
    %v1832 = vunpack.c.l.b16 %v1796
    %v1833 = vunpack.c.l.b16 %v1797
    %v1834 = vunpack.c.l.b16 %v1798
    %v1835 = vunpack.c.l.b16 %v1799
    %v1836 = vunpack.c.l.b16 %v1800
    %v1837 = vunpack.c.l.b16 %v1801
    %v1838 = vunpack.c.l.b16 %v1802
    %v1839 = vunpack.c.l.b16 %v1803
    %v1840 = vunpack.c.l.b16 %v1804
    %v1841 = vpack.c.b16 %v1826, %v1825
    %v1842 = vpack.c.b16 %v1828, %v1827
    %v1843 = vpack.c.b16 %v1830, %v1829
    %v1844 = vpack.c.b16 %v1832, %v1831
    %v1845 = vpack.c.b16 %v1834, %v1833
    %v1846 = vpack.c.b16 %v1836, %v1835
    %v1847 = vpack.c.b16 %v1838, %v1837
    %v1848 = vpack.c.b16 %v1840, %v1839
    %1857 = vmatpush.bf16.msra.mxu0 %v1848
    %1858 = vmatpush.bf16.msra.mxu0 %v1847
    %1859 = vmatpush.bf16.msra.mxu0 %v1846
    %1860 = vmatpush.bf16.msra.mxu0 %v1845
    %1861 = vmatpush.bf16.msra.mxu0 %v1844
    %1862 = vmatpush.bf16.msra.mxu0 %v1843
    %1863 = vmatpush.bf16.msra.mxu0 %v1842
    %1864 = vmatpush.bf16.msra.mxu0 %v1841
    %1865 = vmatmul.bf16.gmra.mxu0 %v1788
    %v1866 = vpop.f32.mrf.mxu0
    %v1867 = vadd.f32 %v1807, %v1866
    %v1868 = vpop.f32.mrf.mxu0
    %1869 = vdwg.mxu0
    %1870 = vst [vmem:[%s7] sm:$0xff] %v1867
    // Predicated region
    $region42: #{attention_model_forward.1} parent=1 // pred_check
      _
    $region43: #{attention_model_forward.1} parent=1 // pred_check_branch
      %1872 = sbr.rel (0) target = $region45
    $region44: #{attention_model_forward.1} parent=1 // pred_region
      _
    $region45: #{attention_model_forward.1} parent=1 // pred_fallthru
      _
    // Predicated region
    $region46: #{attention_model_forward.1} parent=1 // pred_check
      _
    $region47: #{attention_model_forward.1} parent=1 // pred_check_branch
      %1874 = sbr.rel (0) target = $region49
    $region48: #{attention_model_forward.1} parent=1 // pred_region
      _
    $region49: #{attention_model_forward.1} parent=1 // pred_fallthru
      _
    %1875 = vsyncpa [#allocation4], 1
    %1876 = vsyncpa [#allocation6], 1

</llo_original>
